<compile_context>
chip_gen: v7x
topology: tpu7x:2x2x1
jax: 0.10.0
libtpu: 0.0.40
codegen_flags: <defaults>
</compile_context>

<pallas_src>
import math
from functools import partial

import jax
import jax.numpy as jnp
import numpy as np
from jax import lax
from jax.experimental import pallas as pl
from jax.experimental.pallas import tpu as pltpu


def _equal_conv2d_kernel(x_ref, w_ref, b_ref, out_ref, xpad_ref, *, K, P):
    """One batch image per grid step.

    x_ref   : (1, H, W, Cin)     unpadded NHWC input block
    w_ref   : (K*K*Cin, Cout)    EqualLR-scaled weights, (kh, kw, cin) im2col order
    b_ref   : (1, Cout)          bias
    out_ref : (1, H, W, Cout)
    xpad_ref: (H+2P, W+2P, Cin)  VMEM scratch holding the haloed image
    """
    _, H, W, C = x_ref.shape
    Cout = out_ref.shape[3]
    Hp, Wp = H + 2 * P, W + 2 * P

    # ---- build the haloed image in VMEM: zero only the border strips ------
    if P > 0:
        zrow = jnp.zeros((P, Wp, C), jnp.float32)
        xpad_ref[0:P, :, :] = zrow                       # top halo
        xpad_ref[Hp - P:Hp, :, :] = zrow                 # bottom halo
        zcol = jnp.zeros((H, P, C), jnp.float32)
        xpad_ref[P:P + H, 0:P, :] = zcol                 # left halo
        xpad_ref[P:P + H, Wp - P:Wp, :] = zcol           # right halo
    xpad_ref[P:P + H, P:P + W, :] = x_ref[0].astype(jnp.float32)

    # ---- implicit im2col: fuse all K*K taps into ONE MXU matmul -----------
    taps = []
    for kh in range(K):
        for kw in range(K):
            # static ref-slice (zero-cost view), loaded as (H, W, C)
            taps.append(xpad_ref[kh:kh + H, kw:kw + W, :].reshape(H * W, C))
    slab = jnp.concatenate(taps, axis=-1)                # (H*W, K*K*Cin)

    y = jnp.dot(slab, w_ref[...], preferred_element_type=jnp.float32)
    y = y + b_ref[0][None, :]                            # bias add (VPU)
    out_ref[...] = y.reshape(1, H, W, Cout).astype(out_ref.dtype)


@partial(jax.jit, static_argnames=("padding",))
def equal_conv2d_pallas(x_nchw, weight_orig_oihw, bias, *, padding=1):
    """EqualConv2d forward. x: (N,Cin,H,W); weight_orig: (Cout,Cin,K,K); bias: (Cout,)."""
    N, Cin, H, W = x_nchw.shape
    Cout, _, K, _ = weight_orig_oihw.shape
    P = padding
    KK = K * K
    Hp, Wp = H + 2 * P, W + 2 * P

    # EqualLR pre-hook folded into the weight: scale by sqrt(2 / fan_in), then
    # reshape to the im2col contraction layout (kh, kw, cin) x cout.
    scale = math.sqrt(2.0 / (Cin * KK))
    w2d = (jnp.transpose(weight_orig_oihw, (2, 3, 1, 0)) * scale)
    w2d = w2d.reshape(KK * Cin, Cout).astype(jnp.float32)
    b_row = bias.reshape(1, Cout).astype(jnp.float32)

    # NHWC, unpadded: the halo is built inside the kernel (no padded HBM tensor).
    x_nhwc = jnp.transpose(x_nchw, (0, 2, 3, 1)).astype(jnp.float32)

    vmem_bytes = 4 * (2 * H * W * Cin            # double-buffered input blocks
                      + 2 * H * W * Cout         # double-buffered output blocks
                      + KK * Cin * Cout + Cout   # weights + bias (resident)
                      + Hp * Wp * Cin            # halo scratch
                      + 3 * H * W * KK * Cin)    # im2col slab + relayout temps
    vmem_bytes = int(min(max(2 * vmem_bytes, 16 * 1024 * 1024), 64 * 1024 * 1024))

    cost = pl.CostEstimate(
        flops=2 * N * H * W * KK * Cin * Cout,
        transcendentals=0,
        bytes_accessed=4 * (N * H * W * (Cin + Cout) + KK * Cin * Cout + Cout),
    )

    out_nhwc = pl.pallas_call(
        partial(_equal_conv2d_kernel, K=K, P=P),
        out_shape=jax.ShapeDtypeStruct((N, H, W, Cout), x_nchw.dtype),
        grid_spec=pltpu.PrefetchScalarGridSpec(
            num_scalar_prefetch=0,
            grid=(N,),
            in_specs=[
                pl.BlockSpec((1, H, W, Cin), lambda n: (n, 0, 0, 0)),
                pl.BlockSpec((KK * Cin, Cout), lambda n: (0, 0)),
                pl.BlockSpec((1, Cout), lambda n: (0, 0)),
            ],
            out_specs=pl.BlockSpec((1, H, W, Cout), lambda n: (n, 0, 0, 0)),
            scratch_shapes=[pltpu.VMEM((Hp, Wp, Cin), jnp.float32)],
        ),
        compiler_params=pltpu.CompilerParams(
            dimension_semantics=("parallel",),
            vmem_limit_bytes=vmem_bytes,
        ),
        cost_estimate=cost,
    )(x_nhwc, w2d, b_row)

    # TODO(synk): for large H/W or channel counts, additionally tile over row
    # bands (with a P-row halo DMA'd manually) and over Cout blocks so the
    # im2col slab stays within VMEM; whole-image-per-step is right-sized for
    # the shapes exercised here.
    return jnp.transpose(out_nhwc, (0, 3, 1, 2)).astype(x_nchw.dtype)


def _reference(x_nchw, weight_orig_oihw, bias, *, padding):
    """Pure-JAX reference matching the PyTorch EqualConv2d forward."""
    Cout, Cin, K, _ = weight_orig_oihw.shape
    w = weight_orig_oihw * math.sqrt(2.0 / (Cin * K * K))
    y = lax.conv_general_dilated(
        x_nchw, w, window_strides=(1, 1),
        padding=((padding, padding), (padding, padding)),
        dimension_numbers=("NCHW", "OIHW", "NCHW"))
    return y + bias[None, :, None, None]


if __name__ == "__main__":
    key = jax.random.PRNGKey(0)
    k_x, k_w = jax.random.split(key)

    N, Cin, Cout, H, W, K, P = 2, 4, 4, 16, 16, 3, 1
    x = jax.random.normal(k_x, (N, Cin, H, W), dtype=jnp.float32)

    # EqualConv2d init: conv.weight.data.normal_(), conv.bias.data.zero_();
    # the sqrt(2/fan_in) scaling is applied inside the forward (pre-hook).
    w_orig = jax.random.normal(k_w, (Cout, Cin, K, K), dtype=jnp.float32)
    bias = jnp.zeros((Cout,), jnp.float32)

    out = equal_conv2d_pallas(x, w_orig, bias, padding=P)
    out = jax.block_until_ready(out)

    ref = _reference(x, w_orig, bias, padding=P)
    np.testing.assert_allclose(np.asarray(out), np.asarray(ref),
                               rtol=1e-4, atol=1e-4)

    print("KERNEL_OK")
</pallas_src>

<mosaic_0001>
module attributes {stable_mosaic.version = 11 : i64} {
  func.func @_equal_conv2d_kernel(%arg0: i32, %arg1: memref<1x16x16x4xf32, #tpu.memory_space<vmem>>, %arg2: memref<36x4xf32, #tpu.memory_space<vmem>>, %arg3: memref<1x4xf32, #tpu.memory_space<vmem>>, %arg4: memref<1x16x16x4xf32, #tpu.memory_space<vmem>>, %arg5: memref<18x18x4xf32, #tpu.memory_space<vmem>>) attributes {dimension_semantics = [#tpu.dimension_semantics<parallel>], iteration_bounds = array<i64: 2>, scalar_prefetch = 0 : i64, scratch_operands = 1 : i64, tpu.core_type = #tpu.core_type<tc>, window_params = [{transform_indices = @transform_0, window_bounds = array<i64: 1, 16, 16, 4>}, {pipeline_mode = #tpu.pipeline_mode<synchronous>, transform_indices = @transform_1, window_bounds = array<i64: 36, 4>}, {pipeline_mode = #tpu.pipeline_mode<synchronous>, transform_indices = @transform_2, window_bounds = array<i64: 1, 4>}, {transform_indices = @transform_3, window_bounds = array<i64: 1, 16, 16, 4>}]} {
    %cst = arith.constant 0.000000e+00 : f32
    %0 = vector.broadcast %cst : f32 to vector<1x18x4xf32>
    %c0 = arith.constant 0 : index
    %c0_0 = arith.constant 0 : index
    %c0_1 = arith.constant 0 : index
    %1 = vector.load %arg5[%c0, %c0_0, %c0_1] : memref<18x18x4xf32, #tpu.memory_space<vmem>>, vector<1x18x4xf32>
    tpu.vector_store %arg5[%c0, %c0_0, %c0_1], %0 {strides = array<i32>} : memref<18x18x4xf32, #tpu.memory_space<vmem>>, vector<1x18x4xf32>,
    %c17 = arith.constant 17 : index
    %c0_2 = arith.constant 0 : index
    %c0_3 = arith.constant 0 : index
    %2 = vector.load %arg5[%c17, %c0_2, %c0_3] : memref<18x18x4xf32, #tpu.memory_space<vmem>>, vector<1x18x4xf32>
    tpu.vector_store %arg5[%c17, %c0_2, %c0_3], %0 {strides = array<i32>} : memref<18x18x4xf32, #tpu.memory_space<vmem>>, vector<1x18x4xf32>,
    %cst_4 = arith.constant 0.000000e+00 : f32
    %3 = vector.broadcast %cst_4 : f32 to vector<16x1x4xf32>
    %c1 = arith.constant 1 : index
    %c0_5 = arith.constant 0 : index
    %c0_6 = arith.constant 0 : index
    %4 = vector.load %arg5[%c1, %c0_5, %c0_6] : memref<18x18x4xf32, #tpu.memory_space<vmem>>, vector<16x1x4xf32>
    tpu.vector_store %arg5[%c1, %c0_5, %c0_6], %3 {strides = array<i32>} : memref<18x18x4xf32, #tpu.memory_space<vmem>>, vector<16x1x4xf32>,
    %c1_7 = arith.constant 1 : index
    %c17_8 = arith.constant 17 : index
    %c0_9 = arith.constant 0 : index
    %5 = vector.load %arg5[%c1_7, %c17_8, %c0_9] : memref<18x18x4xf32, #tpu.memory_space<vmem>>, vector<16x1x4xf32>
    tpu.vector_store %arg5[%c1_7, %c17_8, %c0_9], %3 {strides = array<i32>} : memref<18x18x4xf32, #tpu.memory_space<vmem>>, vector<16x1x4xf32>,
    %c0_10 = arith.constant 0 : index
    %c0_11 = arith.constant 0 : index
    %c0_12 = arith.constant 0 : index
    %c0_13 = arith.constant 0 : index
    %6 = vector.load %arg1[%c0_10, %c0_11, %c0_12, %c0_13] : memref<1x16x16x4xf32, #tpu.memory_space<vmem>>, vector<1x16x16x4xf32>
    %7 = vector.shape_cast %6 : vector<1x16x16x4xf32> to vector<16x16x4xf32>
    %c1_14 = arith.constant 1 : index
    %c1_15 = arith.constant 1 : index
    %c0_16 = arith.constant 0 : index
    %8 = vector.load %arg5[%c1_14, %c1_15, %c0_16] : memref<18x18x4xf32, #tpu.memory_space<vmem>>, vector<16x16x4xf32>
    tpu.vector_store %arg5[%c1_14, %c1_15, %c0_16], %7 {strides = array<i32>} : memref<18x18x4xf32, #tpu.memory_space<vmem>>, vector<16x16x4xf32>,
    %c0_17 = arith.constant 0 : index
    %c0_18 = arith.constant 0 : index
    %c0_19 = arith.constant 0 : index
    %9 = vector.load %arg5[%c0_17, %c0_18, %c0_19] : memref<18x18x4xf32, #tpu.memory_space<vmem>>, vector<16x16x4xf32>
    %10 = vector.shape_cast %9 : vector<16x16x4xf32> to vector<256x4xf32>
    %c0_20 = arith.constant 0 : index
    %c1_21 = arith.constant 1 : index
    %c0_22 = arith.constant 0 : index
    %11 = vector.load %arg5[%c0_20, %c1_21, %c0_22] : memref<18x18x4xf32, #tpu.memory_space<vmem>>, vector<16x16x4xf32>
    %12 = vector.shape_cast %11 : vector<16x16x4xf32> to vector<256x4xf32>
    %c0_23 = arith.constant 0 : index
    %c2 = arith.constant 2 : index
    %c0_24 = arith.constant 0 : index
    %13 = vector.load %arg5[%c0_23, %c2, %c0_24] : memref<18x18x4xf32, #tpu.memory_space<vmem>>, vector<16x16x4xf32>
    %14 = vector.shape_cast %13 : vector<16x16x4xf32> to vector<256x4xf32>
    %c1_25 = arith.constant 1 : index
    %c0_26 = arith.constant 0 : index
    %c0_27 = arith.constant 0 : index
    %15 = vector.load %arg5[%c1_25, %c0_26, %c0_27] : memref<18x18x4xf32, #tpu.memory_space<vmem>>, vector<16x16x4xf32>
    %16 = vector.shape_cast %15 : vector<16x16x4xf32> to vector<256x4xf32>
    %c1_28 = arith.constant 1 : index
    %c1_29 = arith.constant 1 : index
    %c0_30 = arith.constant 0 : index
    %17 = vector.load %arg5[%c1_28, %c1_29, %c0_30] : memref<18x18x4xf32, #tpu.memory_space<vmem>>, vector<16x16x4xf32>
    %18 = vector.shape_cast %17 : vector<16x16x4xf32> to vector<256x4xf32>
    %c1_31 = arith.constant 1 : index
    %c2_32 = arith.constant 2 : index
    %c0_33 = arith.constant 0 : index
    %19 = vector.load %arg5[%c1_31, %c2_32, %c0_33] : memref<18x18x4xf32, #tpu.memory_space<vmem>>, vector<16x16x4xf32>
    %20 = vector.shape_cast %19 : vector<16x16x4xf32> to vector<256x4xf32>
    %c2_34 = arith.constant 2 : index
    %c0_35 = arith.constant 0 : index
    %c0_36 = arith.constant 0 : index
    %21 = vector.load %arg5[%c2_34, %c0_35, %c0_36] : memref<18x18x4xf32, #tpu.memory_space<vmem>>, vector<16x16x4xf32>
    %22 = vector.shape_cast %21 : vector<16x16x4xf32> to vector<256x4xf32>
    %c2_37 = arith.constant 2 : index
    %c1_38 = arith.constant 1 : index
    %c0_39 = arith.constant 0 : index
    %23 = vector.load %arg5[%c2_37, %c1_38, %c0_39] : memref<18x18x4xf32, #tpu.memory_space<vmem>>, vector<16x16x4xf32>
    %24 = vector.shape_cast %23 : vector<16x16x4xf32> to vector<256x4xf32>
    %c2_40 = arith.constant 2 : index
    %c2_41 = arith.constant 2 : index
    %c0_42 = arith.constant 0 : index
    %25 = vector.load %arg5[%c2_40, %c2_41, %c0_42] : memref<18x18x4xf32, #tpu.memory_space<vmem>>, vector<16x16x4xf32>
    %26 = vector.shape_cast %25 : vector<16x16x4xf32> to vector<256x4xf32>
    %27 = tpu.concatenate %10, %12, %14, %16, %18, %20, %22, %24, %26 in 1 : vector<256x4xf32>, vector<256x4xf32>, vector<256x4xf32>, vector<256x4xf32>, vector<256x4xf32>, vector<256x4xf32>, vector<256x4xf32>, vector<256x4xf32>, vector<256x4xf32> -> vector<256x36xf32>
    %c0_43 = arith.constant 0 : index
    %c0_44 = arith.constant 0 : index
    %28 = vector.load %arg2[%c0_43, %c0_44] : memref<36x4xf32, #tpu.memory_space<vmem>>, vector<36x4xf32>
    %cst_45 = arith.constant dense<0.000000e+00> : vector<256x4xf32>
    %29 = tpu.matmul %27, %28, %cst_45 {dimension_numbers = #tpu.dot_dimension_numbers<[1], [0], [0], [1], [0, 0, 1, 1], [], []>} : vector<256x36xf32>, vector<36x4xf32>, vector<256x4xf32> -> vector<256x4xf32>
    %c0_46 = arith.constant 0 : index
    %c0_47 = arith.constant 0 : index
    %30 = vector.load %arg3[%c0_46, %c0_47] : memref<1x4xf32, #tpu.memory_space<vmem>>, vector<1x4xf32>
    %31 = vector.shape_cast %30 : vector<1x4xf32> to vector<4xf32>
    %32 = vector.shape_cast %31 : vector<4xf32> to vector<1x4xf32>
    %33 = vector.broadcast %32 : vector<1x4xf32> to vector<256x4xf32>
    %34 = arith.addf %29, %33 : vector<256x4xf32>
    %35 = vector.shape_cast %34 : vector<256x4xf32> to vector<1x16x16x4xf32>
    %c0_48 = arith.constant 0 : index
    %c0_49 = arith.constant 0 : index
    %c0_50 = arith.constant 0 : index
    %c0_51 = arith.constant 0 : index
    %36 = vector.load %arg4[%c0_48, %c0_49, %c0_50, %c0_51] : memref<1x16x16x4xf32, #tpu.memory_space<vmem>>, vector<1x16x16x4xf32>
    tpu.vector_store %arg4[%c0_48, %c0_49, %c0_50, %c0_51], %35 {strides = array<i32>} : memref<1x16x16x4xf32, #tpu.memory_space<vmem>>, vector<1x16x16x4xf32>,
    return
  }
  func.func @transform_0(%arg0: i32) -> (i32, i32, i32, i32) {
    %c0_i32 = arith.constant 0 : i32
    %c0_i32_0 = arith.constant 0 : i32
    %c0_i32_1 = arith.constant 0 : i32
    %c0_i32_2 = arith.constant 0 : i32
    return %arg0, %c0_i32, %c0_i32_0, %c0_i32_1 : i32, i32, i32, i32
  }
  func.func @transform_1(%arg0: i32) -> (i32, i32) {
    %c0_i32 = arith.constant 0 : i32
    %c0_i32_0 = arith.constant 0 : i32
    %c0_i32_1 = arith.constant 0 : i32
    return %c0_i32, %c0_i32_0 : i32, i32
  }
  func.func @transform_2(%arg0: i32) -> (i32, i32) {
    %c0_i32 = arith.constant 0 : i32
    %c0_i32_0 = arith.constant 0 : i32
    %c0_i32_1 = arith.constant 0 : i32
    return %c0_i32, %c0_i32_0 : i32, i32
  }
  func.func @transform_3(%arg0: i32) -> (i32, i32, i32, i32) {
    %c0_i32 = arith.constant 0 : i32
    %c0_i32_0 = arith.constant 0 : i32
    %c0_i32_1 = arith.constant 0 : i32
    %c0_i32_2 = arith.constant 0 : i32
    return %arg0, %c0_i32, %c0_i32_0, %c0_i32_1 : i32, i32, i32, i32
  }
}

</mosaic_0001>

<llo_original>
// kernel: equal_conv2d_pallas.1
$region0: #{equal_conv2d_pallas.1}
  #allocation0 [shape = 'u32[]', space=smem, size = 0x4, offset = 0x4, fixed_abs, tag = 'smem constant byte address 0x4 - core index']
  #allocation1 [shape = 'u32[144,128]{1,0:T(1,128)}', space=vmem, size = 0x12000, scoped, tag = 'internal scratch']
  #allocation2 [shape = 'f32[18,18,4]{2,1,0:T(8,128)}', space=vmem, size = 0x36000, scoped, tag = 'scratch operand']
  %s0 = inlined_call_operand.vmem [shape: f32[2,16,16,4], index: 0, kind: input, shape index: {}]
  %s1 = inlined_call_operand.vmem [shape: f32[36,4], index: 1, kind: input, shape index: {}]
  %s2 = inlined_call_operand.vmem [shape: f32[1,4], index: 2, kind: input, shape index: {}]
  %s3 = inlined_call_operand.vmem [shape: f32[2,16,16,4], index: 3, kind: output, shape index: {}]
  %s4 = sld [smem:[#allocation0]]
  $region45: #{equal_conv2d_pallas.1} parent=0
    _
  %s6 = ssub.s32 1, %s4
  %s7 = scalar_select 0, %s6, %s4
  loop: start=0, step=1, limit=4
  $region2: #{equal_conv2d_pallas.1} parent=0 // loop_pre_header
    _
  $region3: #{equal_conv2d_pallas.1} parent=0 // loop_header
    %s9 = sphi 0, %s13
    %p10 = scmp.ge.s32.totalorder %s9, 4
    %s19 = sphi 0, %s21
    %s22 = sphi 0, %s19
    %s23 = sphi 0, %s22
    %s39 = sphi 0, %s23
    %s43 = sphi 0, %s43
    %s45 = sphi 0, %s43
    %s46 = sphi 0, %s45
    %s60 = sphi 0, %s46
    %s64 = sphi 0, %s64
    %s66 = sphi 0, %s64
    %s67 = sphi 0, %s66
    %s81 = sphi 0, %s67
    %s87 = sphi 0, %s89
    %s90 = sphi 0, %s87
    %s91 = sphi 0, %s90
    %s107 = sphi 0, %s91
  $region4: #{equal_conv2d_pallas.1} parent=0 // loop_header_branch
    %12 = sbr.rel (%p10) target = $region8
  $region5: #{equal_conv2d_pallas.1} parent=0 // loop_body
    %s14 = ssub.s32 %s9, 1
    %s15 = ssub.s32 %s9, 2
    %s16 = sadd.s32 %s9, 1
    %s17 = ssub.s32 %s9, %s16
    %p18 = scmp.eq.s32.totalorder %s17, 0
    %s20 = sadd.s32 %s19, 1
    %s21 = scalar_select %p18, %s19, %s20
    %p24 = pneg %p18
    %p25 = scmp.eq.s32.totalorder %s9, 1
    %p26 = por %p24, %p25
    %p27 = scmp.ne.s32.totalorder %s19, %s22
    %p28 = scmp.eq.s32.totalorder %s9, 0
    %p29 = por %p27, %p28
    %p30 = scmp.ne.s32.totalorder %s19, %s22
    %p31 = scmp.eq.s32.totalorder %s14, 1
    %p32 = por %p30, %p31
    %p33 = scmp.ne.s32.totalorder %s22, %s23
    %p34 = scmp.eq.s32.totalorder %s14, 0
    %p35 = por %p33, %p34
    %p36 = scmp.ne.s32.totalorder %s22, %s23
    %p37 = scmp.eq.s32.totalorder %s15, 1
    %p38 = por %p36, %p37
    %p40 = scmp.ne.s32.totalorder %s23, %s39
    %p41 = scmp.eq.s32.totalorder %s15, 0
    %p42 = por %p40, %p41
    %s44 = sadd.s32 %s43, 1
    %p47 = scmp.eq.s32.totalorder %s9, 1
    %p48 = scmp.ne.s32.totalorder %s43, %s45
    %p49 = scmp.eq.s32.totalorder %s9, 0
    %p50 = por %p48, %p49
    %p51 = scmp.ne.s32.totalorder %s43, %s45
    %p52 = scmp.eq.s32.totalorder %s14, 1
    %p53 = por %p51, %p52
    %p54 = scmp.ne.s32.totalorder %s45, %s46
    %p55 = scmp.eq.s32.totalorder %s14, 0
    %p56 = por %p54, %p55
    %p57 = scmp.ne.s32.totalorder %s45, %s46
    %p58 = scmp.eq.s32.totalorder %s15, 1
    %p59 = por %p57, %p58
    %p61 = scmp.ne.s32.totalorder %s46, %s60
    %p62 = scmp.eq.s32.totalorder %s15, 0
    %p63 = por %p61, %p62
    %s65 = sadd.s32 %s64, 1
    %p68 = scmp.eq.s32.totalorder %s9, 1
    %p69 = scmp.ne.s32.totalorder %s64, %s66
    %p70 = scmp.eq.s32.totalorder %s9, 0
    %p71 = por %p69, %p70
    %p72 = scmp.ne.s32.totalorder %s64, %s66
    %p73 = scmp.eq.s32.totalorder %s14, 1
    %p74 = por %p72, %p73
    %p75 = scmp.ne.s32.totalorder %s66, %s67
    %p76 = scmp.eq.s32.totalorder %s14, 0
    %p77 = por %p75, %p76
    %p78 = scmp.ne.s32.totalorder %s66, %s67
    %p79 = scmp.eq.s32.totalorder %s15, 1
    %p80 = por %p78, %p79
    %p82 = scmp.ne.s32.totalorder %s67, %s81
    %p83 = scmp.eq.s32.totalorder %s15, 0
    %p84 = por %p82, %p83
    %s85 = ssub.s32 %s9, %s16
    %p86 = scmp.eq.s32.totalorder %s85, 0
    %s88 = sadd.s32 %s87, 1
    %s89 = scalar_select %p86, %s87, %s88
    %p92 = pneg %p86
    %p93 = scmp.eq.s32.totalorder %s9, 1
    %p94 = por %p92, %p93
    %p95 = scmp.ne.s32.totalorder %s87, %s90
    %p96 = scmp.eq.s32.totalorder %s9, 0
    %p97 = por %p95, %p96
    %p98 = scmp.ne.s32.totalorder %s87, %s90
    %p99 = scmp.eq.s32.totalorder %s14, 1
    %p100 = por %p98, %p99
    %p101 = scmp.ne.s32.totalorder %s90, %s91
    %p102 = scmp.eq.s32.totalorder %s14, 0
    %p103 = por %p101, %p102
    %p104 = scmp.ne.s32.totalorder %s90, %s91
    %p105 = scmp.eq.s32.totalorder %s15, 1
    %p106 = por %p104, %p105
    %p108 = scmp.ne.s32.totalorder %s91, %s107
    %p109 = scmp.eq.s32.totalorder %s15, 0
    %p110 = por %p108, %p109
    %p111 = scmp.le.s32.totalorder 1, %s9
    %p112 = scmp.lt.s32.totalorder %s9, 3
    %p113 = pnand %p111, %p112
    %p114 = pneg %p113
    // Predicated region
    $region9: #{equal_conv2d_pallas.1} parent=5 // pred_check
      _
    $region10: #{equal_conv2d_pallas.1} parent=5 // pred_check_branch
      %116 = sbr.rel (%p113) target = $region12
    $region11: #{equal_conv2d_pallas.1} parent=5 // pred_region
      %s117 = ssub.s32 %s9, 1
      // Predicated region
      $region13: #{equal_conv2d_pallas.1} parent=11 // pred_check
        %p118 = pneg %p56
      $region14: #{equal_conv2d_pallas.1} parent=11 // pred_check_branch
        %120 = sbr.rel (%p118) target = $region16
      $region15: #{equal_conv2d_pallas.1} parent=11 // pred_region
        _
      $region16: #{equal_conv2d_pallas.1} parent=11 // pred_fallthru
        _
      // Predicated region
      $region17: #{equal_conv2d_pallas.1} parent=11 // pred_check
        %p121 = pneg %p77
      $region18: #{equal_conv2d_pallas.1} parent=11 // pred_check_branch
        %123 = sbr.rel (%p121) target = $region20
      $region19: #{equal_conv2d_pallas.1} parent=11 // pred_region
        _
      $region20: #{equal_conv2d_pallas.1} parent=11 // pred_fallthru
        _
    $region12: #{equal_conv2d_pallas.1} parent=5 // pred_fallthru
      _
    %p124 = scmp.lt.s32.totalorder %s9, 2
    // Predicated region
    $region21: #{equal_conv2d_pallas.1} parent=5 // pred_check
      %p125 = pneg %p124
    $region22: #{equal_conv2d_pallas.1} parent=5 // pred_check_branch
      %127 = sbr.rel (%p125) target = $region24
    $region23: #{equal_conv2d_pallas.1} parent=5 // pred_region
      // Predicated region
      $region25: #{equal_conv2d_pallas.1} parent=23 // pred_check
        %p128 = pneg %p29
      $region26: #{equal_conv2d_pallas.1} parent=23 // pred_check_branch
        %130 = sbr.rel (%p128) target = $region28
      $region27: #{equal_conv2d_pallas.1} parent=23 // pred_region
        %p131 = scmp.lt.s32.totalorder %s9, 1
        %s132 = scalar_select %p131, %s9, 1
        %s133 = smul.addr %s132, 32
        %s134 = smul.addr %s133, 8
        %s135 = scalar_lea.vmem %s0, %s134
      $region28: #{equal_conv2d_pallas.1} parent=23 // pred_fallthru
        _
    $region24: #{equal_conv2d_pallas.1} parent=5 // pred_fallthru
      _
    %p136 = scmp.le.s32.totalorder 1, %s9
    %p137 = scmp.lt.s32.totalorder %s9, 3
    %p138 = pnand %p136, %p137
    %p139 = pneg %p138
    // Predicated region
    $region29: #{equal_conv2d_pallas.1} parent=5 // pred_check
      _
    $region30: #{equal_conv2d_pallas.1} parent=5 // pred_check_branch
      %141 = sbr.rel (%p138) target = $region32
    $region31: #{equal_conv2d_pallas.1} parent=5 // pred_region
      %s142 = ssub.s32 %s9, 1
      %p143 = scmp.lt.s32.totalorder %s14, 1
      %s144 = scalar_select %p143, %s14, 1
      %s145 = smul.addr %s144, 32
      %s146 = smul.addr %s145, 8
      %s147 = scalar_lea.vmem %s0, %s146
      %p148 = pneg %p35
      %p149 = pneg %p32
      %p150 = pneg %p56
      %p151 = pneg %p53
      %p152 = pneg %p77
      %p153 = pneg %p74
      %p154 = pneg %p103
      %p155 = pneg %p100
      %p156 = scmp.lt.s32.totalorder %s14, 1
      %s157 = scalar_select %p156, %s14, 1
      %s158 = smul.addr %s157, 32
      %s159 = smul.addr %s158, 8
      %s160 = scalar_lea.vmem %s3, %s159
      %p161 = scmp.lt.s32.totalorder %s14, 1
      %s162 = scalar_select %p161, %s14, 1
      %s163 = smul.addr %s162, 32
      %s164 = smul.addr %s163, 8
      %s165 = scalar_lea.vmem %s0, %s164
      %p166 = scmp.lt.s32.totalorder %s14, 1
      %s167 = scalar_select %p166, %s14, 1
      %s168 = smul.addr %s167, 32
      %s169 = smul.addr %s168, 8
      %s170 = scalar_lea.vmem %s3, %s169
      %vm171 = vcmask 31744
      %172 = vst.msk [vmem:[#allocation2] sm:$0xff] %vm171, 0.0
      %173 = vst.msk [vmem:[#allocation2 + $0x8] sm:$0xff] %vm171, 0.0
      %vm174 = vcmask 25600
      %175 = vst.msk [vmem:[#allocation2 + $0x10] sm:$0x3] %vm174, 0.0
      %s176 = scalar_lea.vmem [#allocation2], 408
      %177 = vst.msk [vmem:[%s176] sm:$0xff] %vm171, 0.0
      %178 = vst.msk [vmem:[%s176 + $0x8] sm:$0xff] %vm171, 0.0
      %179 = vst.msk [vmem:[%s176 + $0x10] sm:$0x3] %vm174, 0.0
      %s180 = scalar_lea.vmem [#allocation2], 24
      %vm181 = vcmask 24576
      %182 = vst.msk [vmem:[%s180] sm:$0x1] %vm181, 0.0
      %183 = vst.msk [vmem:[%s180 + $0x18] sm:$0x1] %vm181, 0.0
      %184 = vst.msk [vmem:[%s180 + $0x30] sm:$0x1] %vm181, 0.0
      %185 = vst.msk [vmem:[%s180 + $0x48] sm:$0x1] %vm181, 0.0
      %186 = vst.msk [vmem:[%s180 + $0x60] sm:$0x1] %vm181, 0.0
      %187 = vst.msk [vmem:[%s180 + $0x78] sm:$0x1] %vm181, 0.0
      %188 = vst.msk [vmem:[%s180 + $0x90] sm:$0x1] %vm181, 0.0
      %189 = vst.msk [vmem:[%s180 + $0xa8] sm:$0x1] %vm181, 0.0
      %190 = vst.msk [vmem:[%s180 + $0xc0] sm:$0x1] %vm181, 0.0
      %191 = vst.msk [vmem:[%s180 + $0xd8] sm:$0x1] %vm181, 0.0
      %192 = vst.msk [vmem:[%s180 + $0xf0] sm:$0x1] %vm181, 0.0
      %193 = vst.msk [vmem:[%s180 + $0x108] sm:$0x1] %vm181, 0.0
      %194 = vst.msk [vmem:[%s180 + $0x120] sm:$0x1] %vm181, 0.0
      %195 = vst.msk [vmem:[%s180 + $0x138] sm:$0x1] %vm181, 0.0
      %196 = vst.msk [vmem:[%s180 + $0x150] sm:$0x1] %vm181, 0.0
      %197 = vst.msk [vmem:[%s180 + $0x168] sm:$0x1] %vm181, 0.0
      %198 = vst.msk [vmem:[%s180 + $0x11] sm:$0x1] %vm181, 0.0
      %199 = vst.msk [vmem:[%s180 + $0x29] sm:$0x1] %vm181, 0.0
      %200 = vst.msk [vmem:[%s180 + $0x41] sm:$0x1] %vm181, 0.0
      %201 = vst.msk [vmem:[%s180 + $0x59] sm:$0x1] %vm181, 0.0
      %202 = vst.msk [vmem:[%s180 + $0x71] sm:$0x1] %vm181, 0.0
      %203 = vst.msk [vmem:[%s180 + $0x89] sm:$0x1] %vm181, 0.0
      %204 = vst.msk [vmem:[%s180 + $0xa1] sm:$0x1] %vm181, 0.0
      %205 = vst.msk [vmem:[%s180 + $0xb9] sm:$0x1] %vm181, 0.0
      %206 = vst.msk [vmem:[%s180 + $0xd1] sm:$0x1] %vm181, 0.0
      %207 = vst.msk [vmem:[%s180 + $0xe9] sm:$0x1] %vm181, 0.0
      %208 = vst.msk [vmem:[%s180 + $0x101] sm:$0x1] %vm181, 0.0
      %209 = vst.msk [vmem:[%s180 + $0x119] sm:$0x1] %vm181, 0.0
      %210 = vst.msk [vmem:[%s180 + $0x131] sm:$0x1] %vm181, 0.0
      %211 = vst.msk [vmem:[%s180 + $0x149] sm:$0x1] %vm181, 0.0
      %212 = vst.msk [vmem:[%s180 + $0x161] sm:$0x1] %vm181, 0.0
      %213 = vst.msk [vmem:[%s180 + $0x179] sm:$0x1] %vm181, 0.0
      %v214 = vld [vmem:[%s165] sm:$0xff]
      %v215 = vld [vmem:[%s165 + $0x8] sm:$0xff]
      %v216 = vld [vmem:[%s165 + $0x10] sm:$0xff]
      %v217 = vld [vmem:[%s165 + $0x18] sm:$0xff]
      %v218 = vld [vmem:[%s165 + $0x20] sm:$0xff]
      %v219 = vld [vmem:[%s165 + $0x28] sm:$0xff]
      %v220 = vld [vmem:[%s165 + $0x30] sm:$0xff]
      %v221 = vld [vmem:[%s165 + $0x38] sm:$0xff]
      %v222 = vld [vmem:[%s165 + $0x40] sm:$0xff]
      %v223 = vld [vmem:[%s165 + $0x48] sm:$0xff]
      %v224 = vld [vmem:[%s165 + $0x50] sm:$0xff]
      %v225 = vld [vmem:[%s165 + $0x58] sm:$0xff]
      %v226 = vld [vmem:[%s165 + $0x60] sm:$0xff]
      %v227 = vld [vmem:[%s165 + $0x68] sm:$0xff]
      %v228 = vld [vmem:[%s165 + $0x70] sm:$0xff]
      %v229 = vld [vmem:[%s165 + $0x78] sm:$0xff]
      %v230 = vld [vmem:[%s165 + $0x80] sm:$0xff]
      %v231 = vld [vmem:[%s165 + $0x88] sm:$0xff]
      %v232 = vld [vmem:[%s165 + $0x90] sm:$0xff]
      %v233 = vld [vmem:[%s165 + $0x98] sm:$0xff]
      %v234 = vld [vmem:[%s165 + $0xa0] sm:$0xff]
      %v235 = vld [vmem:[%s165 + $0xa8] sm:$0xff]
      %v236 = vld [vmem:[%s165 + $0xb0] sm:$0xff]
      %v237 = vld [vmem:[%s165 + $0xb8] sm:$0xff]
      %v238 = vld [vmem:[%s165 + $0xc0] sm:$0xff]
      %v239 = vld [vmem:[%s165 + $0xc8] sm:$0xff]
      %v240 = vld [vmem:[%s165 + $0xd0] sm:$0xff]
      %v241 = vld [vmem:[%s165 + $0xd8] sm:$0xff]
      %v242 = vld [vmem:[%s165 + $0xe0] sm:$0xff]
      %v243 = vld [vmem:[%s165 + $0xe8] sm:$0xff]
      %v244 = vld [vmem:[%s165 + $0xf0] sm:$0xff]
      %v245 = vld [vmem:[%s165 + $0xf8] sm:$0xff]
      %246 = vst.msk [vmem:[%s180 + $0x1] sm:$0xff] %vm171, %v214
      %247 = vst.msk [vmem:[%s180 + $0x9] sm:$0xff] %vm171, %v215
      %248 = vst.msk [vmem:[%s180 + $0x19] sm:$0xff] %vm171, %v216
      %249 = vst.msk [vmem:[%s180 + $0x21] sm:$0xff] %vm171, %v217
      %250 = vst.msk [vmem:[%s180 + $0x31] sm:$0xff] %vm171, %v218
      %251 = vst.msk [vmem:[%s180 + $0x39] sm:$0xff] %vm171, %v219
      %252 = vst.msk [vmem:[%s180 + $0x49] sm:$0xff] %vm171, %v220
      %253 = vst.msk [vmem:[%s180 + $0x51] sm:$0xff] %vm171, %v221
      %254 = vst.msk [vmem:[%s180 + $0x61] sm:$0xff] %vm171, %v222
      %255 = vst.msk [vmem:[%s180 + $0x69] sm:$0xff] %vm171, %v223
      %256 = vst.msk [vmem:[%s180 + $0x79] sm:$0xff] %vm171, %v224
      %257 = vst.msk [vmem:[%s180 + $0x81] sm:$0xff] %vm171, %v225
      %258 = vst.msk [vmem:[%s180 + $0x91] sm:$0xff] %vm171, %v226
      %259 = vst.msk [vmem:[%s180 + $0x99] sm:$0xff] %vm171, %v227
      %260 = vst.msk [vmem:[%s180 + $0xa9] sm:$0xff] %vm171, %v228
      %261 = vst.msk [vmem:[%s180 + $0xb1] sm:$0xff] %vm171, %v229
      %262 = vst.msk [vmem:[%s180 + $0xc1] sm:$0xff] %vm171, %v230
      %263 = vst.msk [vmem:[%s180 + $0xc9] sm:$0xff] %vm171, %v231
      %264 = vst.msk [vmem:[%s180 + $0xd9] sm:$0xff] %vm171, %v232
      %265 = vst.msk [vmem:[%s180 + $0xe1] sm:$0xff] %vm171, %v233
      %266 = vst.msk [vmem:[%s180 + $0xf1] sm:$0xff] %vm171, %v234
      %267 = vst.msk [vmem:[%s180 + $0xf9] sm:$0xff] %vm171, %v235
      %268 = vst.msk [vmem:[%s180 + $0x109] sm:$0xff] %vm171, %v236
      %269 = vst.msk [vmem:[%s180 + $0x111] sm:$0xff] %vm171, %v237
      %270 = vst.msk [vmem:[%s180 + $0x121] sm:$0xff] %vm171, %v238
      %271 = vst.msk [vmem:[%s180 + $0x129] sm:$0xff] %vm171, %v239
      %272 = vst.msk [vmem:[%s180 + $0x139] sm:$0xff] %vm171, %v240
      %273 = vst.msk [vmem:[%s180 + $0x141] sm:$0xff] %vm171, %v241
      %274 = vst.msk [vmem:[%s180 + $0x151] sm:$0xff] %vm171, %v242
      %275 = vst.msk [vmem:[%s180 + $0x159] sm:$0xff] %vm171, %v243
      %276 = vst.msk [vmem:[%s180 + $0x169] sm:$0xff] %vm171, %v244
      %277 = vst.msk [vmem:[%s180 + $0x171] sm:$0xff] %vm171, %v245
      %v278 = vld [vmem:[#allocation2] sm:$0xff]
      %v279 = vld [vmem:[#allocation2 + $0x8] sm:$0xff]
      %v280 = vld [vmem:[#allocation2 + $0x18] sm:$0xff]
      %v281 = vld [vmem:[#allocation2 + $0x20] sm:$0xff]
      %v282 = vld [vmem:[#allocation2 + $0x30] sm:$0xff]
      %v283 = vld [vmem:[#allocation2 + $0x38] sm:$0xff]
      %v284 = vld [vmem:[#allocation2 + $0x48] sm:$0xff]
      %v285 = vld [vmem:[#allocation2 + $0x50] sm:$0xff]
      %v286 = vld [vmem:[#allocation2 + $0x60] sm:$0xff]
      %v287 = vld [vmem:[#allocation2 + $0x68] sm:$0xff]
      %v288 = vld [vmem:[#allocation2 + $0x78] sm:$0xff]
      %v289 = vld [vmem:[#allocation2 + $0x80] sm:$0xff]
      %v290 = vld [vmem:[#allocation2 + $0x90] sm:$0xff]
      %v291 = vld [vmem:[#allocation2 + $0x98] sm:$0xff]
      %v292 = vld [vmem:[#allocation2 + $0xa8] sm:$0xff]
      %v293 = vld [vmem:[#allocation2 + $0xb0] sm:$0xff]
      %v294 = vld [vmem:[#allocation2 + $0xc0] sm:$0xff]
      %v295 = vld [vmem:[#allocation2 + $0xc8] sm:$0xff]
      %v296 = vld [vmem:[#allocation2 + $0xd8] sm:$0xff]
      %v297 = vld [vmem:[#allocation2 + $0xe0] sm:$0xff]
      %v298 = vld [vmem:[#allocation2 + $0xf0] sm:$0xff]
      %v299 = vld [vmem:[#allocation2 + $0xf8] sm:$0xff]
      %v300 = vld [vmem:[#allocation2 + $0x108] sm:$0xff]
      %v301 = vld [vmem:[#allocation2 + $0x110] sm:$0xff]
      %v302 = vld [vmem:[#allocation2 + $0x120] sm:$0xff]
      %v303 = vld [vmem:[#allocation2 + $0x128] sm:$0xff]
      %v304 = vld [vmem:[#allocation2 + $0x138] sm:$0xff]
      %v305 = vld [vmem:[#allocation2 + $0x140] sm:$0xff]
      %v306 = vld [vmem:[#allocation2 + $0x150] sm:$0xff]
      %v307 = vld [vmem:[#allocation2 + $0x158] sm:$0xff]
      %v308 = vld [vmem:[#allocation2 + $0x168] sm:$0xff]
      %v309 = vld [vmem:[#allocation2 + $0x170] sm:$0xff]
      %v310 = vld [vmem:[#allocation2 + $0x1] sm:$0xff]
      %v311 = vld [vmem:[#allocation2 + $0x9] sm:$0xff]
      %v312 = vld [vmem:[#allocation2 + $0x19] sm:$0xff]
      %v313 = vld [vmem:[#allocation2 + $0x21] sm:$0xff]
      %v314 = vld [vmem:[#allocation2 + $0x31] sm:$0xff]
      %v315 = vld [vmem:[#allocation2 + $0x39] sm:$0xff]
      %v316 = vld [vmem:[#allocation2 + $0x49] sm:$0xff]
      %v317 = vld [vmem:[#allocation2 + $0x51] sm:$0xff]
      %v318 = vld [vmem:[#allocation2 + $0x61] sm:$0xff]
      %v319 = vld [vmem:[#allocation2 + $0x69] sm:$0xff]
      %v320 = vld [vmem:[#allocation2 + $0x79] sm:$0xff]
      %v321 = vld [vmem:[#allocation2 + $0x81] sm:$0xff]
      %v322 = vld [vmem:[#allocation2 + $0x91] sm:$0xff]
      %v323 = vld [vmem:[#allocation2 + $0x99] sm:$0xff]
      %v324 = vld [vmem:[#allocation2 + $0xa9] sm:$0xff]
      %v325 = vld [vmem:[#allocation2 + $0xb1] sm:$0xff]
      %v326 = vld [vmem:[#allocation2 + $0xc1] sm:$0xff]
      %v327 = vld [vmem:[#allocation2 + $0xc9] sm:$0xff]
      %v328 = vld [vmem:[#allocation2 + $0xd9] sm:$0xff]
      %v329 = vld [vmem:[#allocation2 + $0xe1] sm:$0xff]
      %v330 = vld [vmem:[#allocation2 + $0xf1] sm:$0xff]
      %v331 = vld [vmem:[#allocation2 + $0xf9] sm:$0xff]
      %v332 = vld [vmem:[#allocation2 + $0x109] sm:$0xff]
      %v333 = vld [vmem:[#allocation2 + $0x111] sm:$0xff]
      %v334 = vld [vmem:[#allocation2 + $0x121] sm:$0xff]
      %v335 = vld [vmem:[#allocation2 + $0x129] sm:$0xff]
      %v336 = vld [vmem:[#allocation2 + $0x139] sm:$0xff]
      %v337 = vld [vmem:[#allocation2 + $0x141] sm:$0xff]
      %v338 = vld [vmem:[#allocation2 + $0x151] sm:$0xff]
      %v339 = vld [vmem:[#allocation2 + $0x159] sm:$0xff]
      %v340 = vld [vmem:[#allocation2 + $0x169] sm:$0xff]
      %v341 = vld [vmem:[#allocation2 + $0x171] sm:$0xff]
      %v342 = vld [vmem:[#allocation2 + $0x2] sm:$0xff]
      %v343 = vld [vmem:[#allocation2 + $0xa] sm:$0xff]
      %v344 = vld [vmem:[#allocation2 + $0x1a] sm:$0xff]
      %v345 = vld [vmem:[#allocation2 + $0x22] sm:$0xff]
      %v346 = vld [vmem:[#allocation2 + $0x32] sm:$0xff]
      %v347 = vld [vmem:[#allocation2 + $0x3a] sm:$0xff]
      %v348 = vld [vmem:[#allocation2 + $0x4a] sm:$0xff]
      %v349 = vld [vmem:[#allocation2 + $0x52] sm:$0xff]
      %v350 = vld [vmem:[#allocation2 + $0x62] sm:$0xff]
      %v351 = vld [vmem:[#allocation2 + $0x6a] sm:$0xff]
      %v352 = vld [vmem:[#allocation2 + $0x7a] sm:$0xff]
      %v353 = vld [vmem:[#allocation2 + $0x82] sm:$0xff]
      %v354 = vld [vmem:[#allocation2 + $0x92] sm:$0xff]
      %v355 = vld [vmem:[#allocation2 + $0x9a] sm:$0xff]
      %v356 = vld [vmem:[#allocation2 + $0xaa] sm:$0xff]
      %v357 = vld [vmem:[#allocation2 + $0xb2] sm:$0xff]
      %v358 = vld [vmem:[#allocation2 + $0xc2] sm:$0xff]
      %v359 = vld [vmem:[#allocation2 + $0xca] sm:$0xff]
      %v360 = vld [vmem:[#allocation2 + $0xda] sm:$0xff]
      %v361 = vld [vmem:[#allocation2 + $0xe2] sm:$0xff]
      %v362 = vld [vmem:[#allocation2 + $0xf2] sm:$0xff]
      %v363 = vld [vmem:[#allocation2 + $0xfa] sm:$0xff]
      %v364 = vld [vmem:[#allocation2 + $0x10a] sm:$0xff]
      %v365 = vld [vmem:[#allocation2 + $0x112] sm:$0xff]
      %v366 = vld [vmem:[#allocation2 + $0x122] sm:$0xff]
      %v367 = vld [vmem:[#allocation2 + $0x12a] sm:$0xff]
      %v368 = vld [vmem:[#allocation2 + $0x13a] sm:$0xff]
      %v369 = vld [vmem:[#allocation2 + $0x142] sm:$0xff]
      %v370 = vld [vmem:[#allocation2 + $0x152] sm:$0xff]
      %v371 = vld [vmem:[#allocation2 + $0x15a] sm:$0xff]
      %v372 = vld [vmem:[#allocation2 + $0x16a] sm:$0xff]
      %v373 = vld [vmem:[#allocation2 + $0x172] sm:$0xff]
      %v374 = vld [vmem:[%s180] sm:$0xff]
      %v375 = vld [vmem:[%s180 + $0x8] sm:$0xff]
      %v376 = vld [vmem:[%s180 + $0x18] sm:$0xff]
      %v377 = vld [vmem:[%s180 + $0x20] sm:$0xff]
      %v378 = vld [vmem:[%s180 + $0x30] sm:$0xff]
      %v379 = vld [vmem:[%s180 + $0x38] sm:$0xff]
      %v380 = vld [vmem:[%s180 + $0x48] sm:$0xff]
      %v381 = vld [vmem:[%s180 + $0x50] sm:$0xff]
      %v382 = vld [vmem:[%s180 + $0x60] sm:$0xff]
      %v383 = vld [vmem:[%s180 + $0x68] sm:$0xff]
      %v384 = vld [vmem:[%s180 + $0x78] sm:$0xff]
      %v385 = vld [vmem:[%s180 + $0x80] sm:$0xff]
      %v386 = vld [vmem:[%s180 + $0x90] sm:$0xff]
      %v387 = vld [vmem:[%s180 + $0x98] sm:$0xff]
      %v388 = vld [vmem:[%s180 + $0xa8] sm:$0xff]
      %v389 = vld [vmem:[%s180 + $0xb0] sm:$0xff]
      %v390 = vld [vmem:[%s180 + $0xc0] sm:$0xff]
      %v391 = vld [vmem:[%s180 + $0xc8] sm:$0xff]
      %v392 = vld [vmem:[%s180 + $0xd8] sm:$0xff]
      %v393 = vld [vmem:[%s180 + $0xe0] sm:$0xff]
      %v394 = vld [vmem:[%s180 + $0xf0] sm:$0xff]
      %v395 = vld [vmem:[%s180 + $0xf8] sm:$0xff]
      %v396 = vld [vmem:[%s180 + $0x108] sm:$0xff]
      %v397 = vld [vmem:[%s180 + $0x110] sm:$0xff]
      %v398 = vld [vmem:[%s180 + $0x120] sm:$0xff]
      %v399 = vld [vmem:[%s180 + $0x128] sm:$0xff]
      %v400 = vld [vmem:[%s180 + $0x138] sm:$0xff]
      %v401 = vld [vmem:[%s180 + $0x140] sm:$0xff]
      %v402 = vld [vmem:[%s180 + $0x150] sm:$0xff]
      %v403 = vld [vmem:[%s180 + $0x158] sm:$0xff]
      %v404 = vld [vmem:[%s180 + $0x168] sm:$0xff]
      %v405 = vld [vmem:[%s180 + $0x170] sm:$0xff]
      %v406 = vld [vmem:[%s180 + $0x1] sm:$0xff]
      %v407 = vld [vmem:[%s180 + $0x9] sm:$0xff]
      %v408 = vld [vmem:[%s180 + $0x19] sm:$0xff]
      %v409 = vld [vmem:[%s180 + $0x21] sm:$0xff]
      %v410 = vld [vmem:[%s180 + $0x31] sm:$0xff]
      %v411 = vld [vmem:[%s180 + $0x39] sm:$0xff]
      %v412 = vld [vmem:[%s180 + $0x49] sm:$0xff]
      %v413 = vld [vmem:[%s180 + $0x51] sm:$0xff]
      %v414 = vld [vmem:[%s180 + $0x61] sm:$0xff]
      %v415 = vld [vmem:[%s180 + $0x69] sm:$0xff]
      %v416 = vld [vmem:[%s180 + $0x79] sm:$0xff]
      %v417 = vld [vmem:[%s180 + $0x81] sm:$0xff]
      %v418 = vld [vmem:[%s180 + $0x91] sm:$0xff]
      %v419 = vld [vmem:[%s180 + $0x99] sm:$0xff]
      %v420 = vld [vmem:[%s180 + $0xa9] sm:$0xff]
      %v421 = vld [vmem:[%s180 + $0xb1] sm:$0xff]
      %v422 = vld [vmem:[%s180 + $0xc1] sm:$0xff]
      %v423 = vld [vmem:[%s180 + $0xc9] sm:$0xff]
      %v424 = vld [vmem:[%s180 + $0xd9] sm:$0xff]
      %v425 = vld [vmem:[%s180 + $0xe1] sm:$0xff]
      %v426 = vld [vmem:[%s180 + $0xf1] sm:$0xff]
      %v427 = vld [vmem:[%s180 + $0xf9] sm:$0xff]
      %v428 = vld [vmem:[%s180 + $0x109] sm:$0xff]
      %v429 = vld [vmem:[%s180 + $0x111] sm:$0xff]
      %v430 = vld [vmem:[%s180 + $0x121] sm:$0xff]
      %v431 = vld [vmem:[%s180 + $0x129] sm:$0xff]
      %v432 = vld [vmem:[%s180 + $0x139] sm:$0xff]
      %v433 = vld [vmem:[%s180 + $0x141] sm:$0xff]
      %v434 = vld [vmem:[%s180 + $0x151] sm:$0xff]
      %v435 = vld [vmem:[%s180 + $0x159] sm:$0xff]
      %v436 = vld [vmem:[%s180 + $0x169] sm:$0xff]
      %v437 = vld [vmem:[%s180 + $0x171] sm:$0xff]
      %v438 = vld [vmem:[%s180 + $0x2] sm:$0xff]
      %v439 = vld [vmem:[%s180 + $0xa] sm:$0xff]
      %v440 = vld [vmem:[%s180 + $0x1a] sm:$0xff]
      %v441 = vld [vmem:[%s180 + $0x22] sm:$0xff]
      %v442 = vld [vmem:[%s180 + $0x32] sm:$0xff]
      %v443 = vld [vmem:[%s180 + $0x3a] sm:$0xff]
      %v444 = vld [vmem:[%s180 + $0x4a] sm:$0xff]
      %v445 = vld [vmem:[%s180 + $0x52] sm:$0xff]
      %v446 = vld [vmem:[%s180 + $0x62] sm:$0xff]
      %v447 = vld [vmem:[%s180 + $0x6a] sm:$0xff]
      %v448 = vld [vmem:[%s180 + $0x7a] sm:$0xff]
      %v449 = vld [vmem:[%s180 + $0x82] sm:$0xff]
      %v450 = vld [vmem:[%s180 + $0x92] sm:$0xff]
      %v451 = vld [vmem:[%s180 + $0x9a] sm:$0xff]
      %v452 = vld [vmem:[%s180 + $0xaa] sm:$0xff]
      %v453 = vld [vmem:[%s180 + $0xb2] sm:$0xff]
      %v454 = vld [vmem:[%s180 + $0xc2] sm:$0xff]
      %v455 = vld [vmem:[%s180 + $0xca] sm:$0xff]
      %v456 = vld [vmem:[%s180 + $0xda] sm:$0xff]
      %v457 = vld [vmem:[%s180 + $0xe2] sm:$0xff]
      %v458 = vld [vmem:[%s180 + $0xf2] sm:$0xff]
      %v459 = vld [vmem:[%s180 + $0xfa] sm:$0xff]
      %v460 = vld [vmem:[%s180 + $0x10a] sm:$0xff]
      %v461 = vld [vmem:[%s180 + $0x112] sm:$0xff]
      %v462 = vld [vmem:[%s180 + $0x122] sm:$0xff]
      %v463 = vld [vmem:[%s180 + $0x12a] sm:$0xff]
      %v464 = vld [vmem:[%s180 + $0x13a] sm:$0xff]
      %v465 = vld [vmem:[%s180 + $0x142] sm:$0xff]
      %v466 = vld [vmem:[%s180 + $0x152] sm:$0xff]
      %v467 = vld [vmem:[%s180 + $0x15a] sm:$0xff]
      %v468 = vld [vmem:[%s180 + $0x16a] sm:$0xff]
      %v469 = vld [vmem:[%s180 + $0x172] sm:$0xff]
      %s470 = scalar_lea.vmem [#allocation2], 48
      %v471 = vld [vmem:[%s470] sm:$0xff]
      %v472 = vld [vmem:[%s470 + $0x8] sm:$0xff]
      %v473 = vld [vmem:[%s470 + $0x18] sm:$0xff]
      %v474 = vld [vmem:[%s470 + $0x20] sm:$0xff]
      %v475 = vld [vmem:[%s470 + $0x30] sm:$0xff]
      %v476 = vld [vmem:[%s470 + $0x38] sm:$0xff]
      %v477 = vld [vmem:[%s470 + $0x48] sm:$0xff]
      %v478 = vld [vmem:[%s470 + $0x50] sm:$0xff]
      %v479 = vld [vmem:[%s470 + $0x60] sm:$0xff]
      %v480 = vld [vmem:[%s470 + $0x68] sm:$0xff]
      %v481 = vld [vmem:[%s470 + $0x78] sm:$0xff]
      %v482 = vld [vmem:[%s470 + $0x80] sm:$0xff]
      %v483 = vld [vmem:[%s470 + $0x90] sm:$0xff]
      %v484 = vld [vmem:[%s470 + $0x98] sm:$0xff]
      %v485 = vld [vmem:[%s470 + $0xa8] sm:$0xff]
      %v486 = vld [vmem:[%s470 + $0xb0] sm:$0xff]
      %v487 = vld [vmem:[%s470 + $0xc0] sm:$0xff]
      %v488 = vld [vmem:[%s470 + $0xc8] sm:$0xff]
      %v489 = vld [vmem:[%s470 + $0xd8] sm:$0xff]
      %v490 = vld [vmem:[%s470 + $0xe0] sm:$0xff]
      %v491 = vld [vmem:[%s470 + $0xf0] sm:$0xff]
      %v492 = vld [vmem:[%s470 + $0xf8] sm:$0xff]
      %v493 = vld [vmem:[%s470 + $0x108] sm:$0xff]
      %v494 = vld [vmem:[%s470 + $0x110] sm:$0xff]
      %v495 = vld [vmem:[%s470 + $0x120] sm:$0xff]
      %v496 = vld [vmem:[%s470 + $0x128] sm:$0xff]
      %v497 = vld [vmem:[%s470 + $0x138] sm:$0xff]
      %v498 = vld [vmem:[%s470 + $0x140] sm:$0xff]
      %v499 = vld [vmem:[%s470 + $0x150] sm:$0xff]
      %v500 = vld [vmem:[%s470 + $0x158] sm:$0xff]
      %v501 = vld [vmem:[%s470 + $0x168] sm:$0xff]
      %v502 = vld [vmem:[%s470 + $0x170] sm:$0xff]
      %v503 = vld [vmem:[%s470 + $0x1] sm:$0xff]
      %v504 = vld [vmem:[%s470 + $0x9] sm:$0xff]
      %v505 = vld [vmem:[%s470 + $0x19] sm:$0xff]
      %v506 = vld [vmem:[%s470 + $0x21] sm:$0xff]
      %v507 = vld [vmem:[%s470 + $0x31] sm:$0xff]
      %v508 = vld [vmem:[%s470 + $0x39] sm:$0xff]
      %v509 = vld [vmem:[%s470 + $0x49] sm:$0xff]
      %v510 = vld [vmem:[%s470 + $0x51] sm:$0xff]
      %v511 = vld [vmem:[%s470 + $0x61] sm:$0xff]
      %v512 = vld [vmem:[%s470 + $0x69] sm:$0xff]
      %v513 = vld [vmem:[%s470 + $0x79] sm:$0xff]
      %v514 = vld [vmem:[%s470 + $0x81] sm:$0xff]
      %v515 = vld [vmem:[%s470 + $0x91] sm:$0xff]
      %v516 = vld [vmem:[%s470 + $0x99] sm:$0xff]
      %v517 = vld [vmem:[%s470 + $0xa9] sm:$0xff]
      %v518 = vld [vmem:[%s470 + $0xb1] sm:$0xff]
      %v519 = vld [vmem:[%s470 + $0xc1] sm:$0xff]
      %v520 = vld [vmem:[%s470 + $0xc9] sm:$0xff]
      %v521 = vld [vmem:[%s470 + $0xd9] sm:$0xff]
      %v522 = vld [vmem:[%s470 + $0xe1] sm:$0xff]
      %v523 = vld [vmem:[%s470 + $0xf1] sm:$0xff]
      %v524 = vld [vmem:[%s470 + $0xf9] sm:$0xff]
      %v525 = vld [vmem:[%s470 + $0x109] sm:$0xff]
      %v526 = vld [vmem:[%s470 + $0x111] sm:$0xff]
      %v527 = vld [vmem:[%s470 + $0x121] sm:$0xff]
      %v528 = vld [vmem:[%s470 + $0x129] sm:$0xff]
      %v529 = vld [vmem:[%s470 + $0x139] sm:$0xff]
      %v530 = vld [vmem:[%s470 + $0x141] sm:$0xff]
      %v531 = vld [vmem:[%s470 + $0x151] sm:$0xff]
      %v532 = vld [vmem:[%s470 + $0x159] sm:$0xff]
      %v533 = vld [vmem:[%s470 + $0x169] sm:$0xff]
      %v534 = vld [vmem:[%s470 + $0x171] sm:$0xff]
      %v535 = vld [vmem:[%s470 + $0x2] sm:$0xff]
      %v536 = vld [vmem:[%s470 + $0xa] sm:$0xff]
      %v537 = vld [vmem:[%s470 + $0x1a] sm:$0xff]
      %v538 = vld [vmem:[%s470 + $0x22] sm:$0xff]
      %v539 = vld [vmem:[%s470 + $0x32] sm:$0xff]
      %v540 = vld [vmem:[%s470 + $0x3a] sm:$0xff]
      %v541 = vld [vmem:[%s470 + $0x4a] sm:$0xff]
      %v542 = vld [vmem:[%s470 + $0x52] sm:$0xff]
      %v543 = vld [vmem:[%s470 + $0x62] sm:$0xff]
      %v544 = vld [vmem:[%s470 + $0x6a] sm:$0xff]
      %v545 = vld [vmem:[%s470 + $0x7a] sm:$0xff]
      %v546 = vld [vmem:[%s470 + $0x82] sm:$0xff]
      %v547 = vld [vmem:[%s470 + $0x92] sm:$0xff]
      %v548 = vld [vmem:[%s470 + $0x9a] sm:$0xff]
      %v549 = vld [vmem:[%s470 + $0xaa] sm:$0xff]
      %v550 = vld [vmem:[%s470 + $0xb2] sm:$0xff]
      %v551 = vld [vmem:[%s470 + $0xc2] sm:$0xff]
      %v552 = vld [vmem:[%s470 + $0xca] sm:$0xff]
      %v553 = vld [vmem:[%s470 + $0xda] sm:$0xff]
      %v554 = vld [vmem:[%s470 + $0xe2] sm:$0xff]
      %v555 = vld [vmem:[%s470 + $0xf2] sm:$0xff]
      %v556 = vld [vmem:[%s470 + $0xfa] sm:$0xff]
      %v557 = vld [vmem:[%s470 + $0x10a] sm:$0xff]
      %v558 = vld [vmem:[%s470 + $0x112] sm:$0xff]
      %v559 = vld [vmem:[%s470 + $0x122] sm:$0xff]
      %v560 = vld [vmem:[%s470 + $0x12a] sm:$0xff]
      %v561 = vld [vmem:[%s470 + $0x13a] sm:$0xff]
      %v562 = vld [vmem:[%s470 + $0x142] sm:$0xff]
      %v563 = vld [vmem:[%s470 + $0x152] sm:$0xff]
      %v564 = vld [vmem:[%s470 + $0x15a] sm:$0xff]
      %v565 = vld [vmem:[%s470 + $0x16a] sm:$0xff]
      %v566 = vld [vmem:[%s470 + $0x172] sm:$0xff]
      %599 = vrot.lane.b32.xlu0 %v310, 4
      %v600 = vpop.permute.xlu0 %599
      %601 = vrot.lane.b32.xlu0 %v311, 4
      %v602 = vpop.permute.xlu0 %601
      %603 = vrot.lane.b32.xlu0 %v312, 4
      %v604 = vpop.permute.xlu0 %603
      %605 = vrot.lane.b32.xlu0 %v313, 4
      %v606 = vpop.permute.xlu0 %605
      %607 = vrot.lane.b32.xlu0 %v314, 4
      %v608 = vpop.permute.xlu0 %607
      %609 = vrot.lane.b32.xlu0 %v315, 4
      %v610 = vpop.permute.xlu0 %609
      %611 = vrot.lane.b32.xlu0 %v316, 4
      %v612 = vpop.permute.xlu0 %611
      %613 = vrot.lane.b32.xlu0 %v317, 4
      %v614 = vpop.permute.xlu0 %613
      %615 = vrot.lane.b32.xlu0 %v318, 4
      %v616 = vpop.permute.xlu0 %615
      %617 = vrot.lane.b32.xlu0 %v319, 4
      %v618 = vpop.permute.xlu0 %617
      %619 = vrot.lane.b32.xlu0 %v320, 4
      %v620 = vpop.permute.xlu0 %619
      %621 = vrot.lane.b32.xlu0 %v321, 4
      %v622 = vpop.permute.xlu0 %621
      %623 = vrot.lane.b32.xlu0 %v322, 4
      %v624 = vpop.permute.xlu0 %623
      %625 = vrot.lane.b32.xlu0 %v323, 4
      %v626 = vpop.permute.xlu0 %625
      %627 = vrot.lane.b32.xlu0 %v324, 4
      %v628 = vpop.permute.xlu0 %627
      %629 = vrot.lane.b32.xlu0 %v325, 4
      %v630 = vpop.permute.xlu0 %629
      %631 = vrot.lane.b32.xlu0 %v326, 4
      %v632 = vpop.permute.xlu0 %631
      %633 = vrot.lane.b32.xlu0 %v327, 4
      %v634 = vpop.permute.xlu0 %633
      %635 = vrot.lane.b32.xlu0 %v328, 4
      %v636 = vpop.permute.xlu0 %635
      %637 = vrot.lane.b32.xlu0 %v329, 4
      %v638 = vpop.permute.xlu0 %637
      %639 = vrot.lane.b32.xlu0 %v330, 4
      %v640 = vpop.permute.xlu0 %639
      %641 = vrot.lane.b32.xlu0 %v331, 4
      %v642 = vpop.permute.xlu0 %641
      %643 = vrot.lane.b32.xlu0 %v332, 4
      %v644 = vpop.permute.xlu0 %643
      %645 = vrot.lane.b32.xlu0 %v333, 4
      %v646 = vpop.permute.xlu0 %645
      %647 = vrot.lane.b32.xlu0 %v334, 4
      %v648 = vpop.permute.xlu0 %647
      %649 = vrot.lane.b32.xlu0 %v335, 4
      %v650 = vpop.permute.xlu0 %649
      %651 = vrot.lane.b32.xlu0 %v336, 4
      %v652 = vpop.permute.xlu0 %651
      %653 = vrot.lane.b32.xlu0 %v337, 4
      %v654 = vpop.permute.xlu0 %653
      %655 = vrot.lane.b32.xlu0 %v338, 4
      %v656 = vpop.permute.xlu0 %655
      %657 = vrot.lane.b32.xlu0 %v339, 4
      %v658 = vpop.permute.xlu0 %657
      %659 = vrot.lane.b32.xlu0 %v340, 4
      %v660 = vpop.permute.xlu0 %659
      %661 = vrot.lane.b32.xlu0 %v341, 4
      %v662 = vpop.permute.xlu0 %661
      %727 = vrot.lane.b32.xlu0 %v342, 8
      %v728 = vpop.permute.xlu0 %727
      %729 = vrot.lane.b32.xlu0 %v343, 8
      %v730 = vpop.permute.xlu0 %729
      %731 = vrot.lane.b32.xlu0 %v344, 8
      %v732 = vpop.permute.xlu0 %731
      %733 = vrot.lane.b32.xlu0 %v345, 8
      %v734 = vpop.permute.xlu0 %733
      %735 = vrot.lane.b32.xlu0 %v346, 8
      %v736 = vpop.permute.xlu0 %735
      %737 = vrot.lane.b32.xlu0 %v347, 8
      %v738 = vpop.permute.xlu0 %737
      %739 = vrot.lane.b32.xlu0 %v348, 8
      %v740 = vpop.permute.xlu0 %739
      %741 = vrot.lane.b32.xlu0 %v349, 8
      %v742 = vpop.permute.xlu0 %741
      %743 = vrot.lane.b32.xlu0 %v350, 8
      %v744 = vpop.permute.xlu0 %743
      %745 = vrot.lane.b32.xlu0 %v351, 8
      %v746 = vpop.permute.xlu0 %745
      %747 = vrot.lane.b32.xlu0 %v352, 8
      %v748 = vpop.permute.xlu0 %747
      %749 = vrot.lane.b32.xlu0 %v353, 8
      %v750 = vpop.permute.xlu0 %749
      %751 = vrot.lane.b32.xlu0 %v354, 8
      %v752 = vpop.permute.xlu0 %751
      %753 = vrot.lane.b32.xlu0 %v355, 8
      %v754 = vpop.permute.xlu0 %753
      %755 = vrot.lane.b32.xlu0 %v356, 8
      %v756 = vpop.permute.xlu0 %755
      %757 = vrot.lane.b32.xlu0 %v357, 8
      %v758 = vpop.permute.xlu0 %757
      %759 = vrot.lane.b32.xlu0 %v358, 8
      %v760 = vpop.permute.xlu0 %759
      %761 = vrot.lane.b32.xlu0 %v359, 8
      %v762 = vpop.permute.xlu0 %761
      %763 = vrot.lane.b32.xlu0 %v360, 8
      %v764 = vpop.permute.xlu0 %763
      %765 = vrot.lane.b32.xlu0 %v361, 8
      %v766 = vpop.permute.xlu0 %765
      %767 = vrot.lane.b32.xlu0 %v362, 8
      %v768 = vpop.permute.xlu0 %767
      %769 = vrot.lane.b32.xlu0 %v363, 8
      %v770 = vpop.permute.xlu0 %769
      %771 = vrot.lane.b32.xlu0 %v364, 8
      %v772 = vpop.permute.xlu0 %771
      %773 = vrot.lane.b32.xlu0 %v365, 8
      %v774 = vpop.permute.xlu0 %773
      %775 = vrot.lane.b32.xlu0 %v366, 8
      %v776 = vpop.permute.xlu0 %775
      %777 = vrot.lane.b32.xlu0 %v367, 8
      %v778 = vpop.permute.xlu0 %777
      %779 = vrot.lane.b32.xlu0 %v368, 8
      %v780 = vpop.permute.xlu0 %779
      %781 = vrot.lane.b32.xlu0 %v369, 8
      %v782 = vpop.permute.xlu0 %781
      %783 = vrot.lane.b32.xlu0 %v370, 8
      %v784 = vpop.permute.xlu0 %783
      %785 = vrot.lane.b32.xlu0 %v371, 8
      %v786 = vpop.permute.xlu0 %785
      %787 = vrot.lane.b32.xlu0 %v372, 8
      %v788 = vpop.permute.xlu0 %787
      %789 = vrot.lane.b32.xlu0 %v373, 8
      %v790 = vpop.permute.xlu0 %789
      %855 = vrot.lane.b32.xlu0 %v374, 12
      %v856 = vpop.permute.xlu0 %855
      %857 = vrot.lane.b32.xlu0 %v375, 12
      %v858 = vpop.permute.xlu0 %857
      %859 = vrot.lane.b32.xlu0 %v376, 12
      %v860 = vpop.permute.xlu0 %859
      %861 = vrot.lane.b32.xlu0 %v377, 12
      %v862 = vpop.permute.xlu0 %861
      %863 = vrot.lane.b32.xlu0 %v378, 12
      %v864 = vpop.permute.xlu0 %863
      %865 = vrot.lane.b32.xlu0 %v379, 12
      %v866 = vpop.permute.xlu0 %865
      %867 = vrot.lane.b32.xlu0 %v380, 12
      %v868 = vpop.permute.xlu0 %867
      %869 = vrot.lane.b32.xlu0 %v381, 12
      %v870 = vpop.permute.xlu0 %869
      %871 = vrot.lane.b32.xlu0 %v382, 12
      %v872 = vpop.permute.xlu0 %871
      %873 = vrot.lane.b32.xlu0 %v383, 12
      %v874 = vpop.permute.xlu0 %873
      %875 = vrot.lane.b32.xlu0 %v384, 12
      %v876 = vpop.permute.xlu0 %875
      %877 = vrot.lane.b32.xlu0 %v385, 12
      %v878 = vpop.permute.xlu0 %877
      %879 = vrot.lane.b32.xlu0 %v386, 12
      %v880 = vpop.permute.xlu0 %879
      %881 = vrot.lane.b32.xlu0 %v387, 12
      %v882 = vpop.permute.xlu0 %881
      %883 = vrot.lane.b32.xlu0 %v388, 12
      %v884 = vpop.permute.xlu0 %883
      %885 = vrot.lane.b32.xlu0 %v389, 12
      %v886 = vpop.permute.xlu0 %885
      %887 = vrot.lane.b32.xlu0 %v390, 12
      %v888 = vpop.permute.xlu0 %887
      %889 = vrot.lane.b32.xlu0 %v391, 12
      %v890 = vpop.permute.xlu0 %889
      %891 = vrot.lane.b32.xlu0 %v392, 12
      %v892 = vpop.permute.xlu0 %891
      %893 = vrot.lane.b32.xlu0 %v393, 12
      %v894 = vpop.permute.xlu0 %893
      %895 = vrot.lane.b32.xlu0 %v394, 12
      %v896 = vpop.permute.xlu0 %895
      %897 = vrot.lane.b32.xlu0 %v395, 12
      %v898 = vpop.permute.xlu0 %897
      %899 = vrot.lane.b32.xlu0 %v396, 12
      %v900 = vpop.permute.xlu0 %899
      %901 = vrot.lane.b32.xlu0 %v397, 12
      %v902 = vpop.permute.xlu0 %901
      %903 = vrot.lane.b32.xlu0 %v398, 12
      %v904 = vpop.permute.xlu0 %903
      %905 = vrot.lane.b32.xlu0 %v399, 12
      %v906 = vpop.permute.xlu0 %905
      %907 = vrot.lane.b32.xlu0 %v400, 12
      %v908 = vpop.permute.xlu0 %907
      %909 = vrot.lane.b32.xlu0 %v401, 12
      %v910 = vpop.permute.xlu0 %909
      %911 = vrot.lane.b32.xlu0 %v402, 12
      %v912 = vpop.permute.xlu0 %911
      %913 = vrot.lane.b32.xlu0 %v403, 12
      %v914 = vpop.permute.xlu0 %913
      %915 = vrot.lane.b32.xlu0 %v404, 12
      %v916 = vpop.permute.xlu0 %915
      %917 = vrot.lane.b32.xlu0 %v405, 12
      %v918 = vpop.permute.xlu0 %917
      %983 = vrot.lane.b32.xlu0 %v406, 16
      %v984 = vpop.permute.xlu0 %983
      %985 = vrot.lane.b32.xlu0 %v407, 16
      %v986 = vpop.permute.xlu0 %985
      %987 = vrot.lane.b32.xlu0 %v408, 16
      %v988 = vpop.permute.xlu0 %987
      %989 = vrot.lane.b32.xlu0 %v409, 16
      %v990 = vpop.permute.xlu0 %989
      %991 = vrot.lane.b32.xlu0 %v410, 16
      %v992 = vpop.permute.xlu0 %991
      %993 = vrot.lane.b32.xlu0 %v411, 16
      %v994 = vpop.permute.xlu0 %993
      %995 = vrot.lane.b32.xlu0 %v412, 16
      %v996 = vpop.permute.xlu0 %995
      %997 = vrot.lane.b32.xlu0 %v413, 16
      %v998 = vpop.permute.xlu0 %997
      %999 = vrot.lane.b32.xlu0 %v414, 16
      %v1000 = vpop.permute.xlu0 %999
      %1001 = vrot.lane.b32.xlu0 %v415, 16
      %v1002 = vpop.permute.xlu0 %1001
      %1003 = vrot.lane.b32.xlu0 %v416, 16
      %v1004 = vpop.permute.xlu0 %1003
      %1005 = vrot.lane.b32.xlu0 %v417, 16
      %v1006 = vpop.permute.xlu0 %1005
      %1007 = vrot.lane.b32.xlu0 %v418, 16
      %v1008 = vpop.permute.xlu0 %1007
      %1009 = vrot.lane.b32.xlu0 %v419, 16
      %v1010 = vpop.permute.xlu0 %1009
      %1011 = vrot.lane.b32.xlu0 %v420, 16
      %v1012 = vpop.permute.xlu0 %1011
      %1013 = vrot.lane.b32.xlu0 %v421, 16
      %v1014 = vpop.permute.xlu0 %1013
      %1015 = vrot.lane.b32.xlu0 %v422, 16
      %v1016 = vpop.permute.xlu0 %1015
      %1017 = vrot.lane.b32.xlu0 %v423, 16
      %v1018 = vpop.permute.xlu0 %1017
      %1019 = vrot.lane.b32.xlu0 %v424, 16
      %v1020 = vpop.permute.xlu0 %1019
      %1021 = vrot.lane.b32.xlu0 %v425, 16
      %v1022 = vpop.permute.xlu0 %1021
      %1023 = vrot.lane.b32.xlu0 %v426, 16
      %v1024 = vpop.permute.xlu0 %1023
      %1025 = vrot.lane.b32.xlu0 %v427, 16
      %v1026 = vpop.permute.xlu0 %1025
      %1027 = vrot.lane.b32.xlu0 %v428, 16
      %v1028 = vpop.permute.xlu0 %1027
      %1029 = vrot.lane.b32.xlu0 %v429, 16
      %v1030 = vpop.permute.xlu0 %1029
      %1031 = vrot.lane.b32.xlu0 %v430, 16
      %v1032 = vpop.permute.xlu0 %1031
      %1033 = vrot.lane.b32.xlu0 %v431, 16
      %v1034 = vpop.permute.xlu0 %1033
      %1035 = vrot.lane.b32.xlu0 %v432, 16
      %v1036 = vpop.permute.xlu0 %1035
      %1037 = vrot.lane.b32.xlu0 %v433, 16
      %v1038 = vpop.permute.xlu0 %1037
      %1039 = vrot.lane.b32.xlu0 %v434, 16
      %v1040 = vpop.permute.xlu0 %1039
      %1041 = vrot.lane.b32.xlu0 %v435, 16
      %v1042 = vpop.permute.xlu0 %1041
      %1043 = vrot.lane.b32.xlu0 %v436, 16
      %v1044 = vpop.permute.xlu0 %1043
      %1045 = vrot.lane.b32.xlu0 %v437, 16
      %v1046 = vpop.permute.xlu0 %1045
      %1111 = vrot.lane.b32.xlu0 %v438, 20
      %v1112 = vpop.permute.xlu0 %1111
      %1113 = vrot.lane.b32.xlu0 %v439, 20
      %v1114 = vpop.permute.xlu0 %1113
      %1115 = vrot.lane.b32.xlu0 %v440, 20
      %v1116 = vpop.permute.xlu0 %1115
      %1117 = vrot.lane.b32.xlu0 %v441, 20
      %v1118 = vpop.permute.xlu0 %1117
      %1119 = vrot.lane.b32.xlu0 %v442, 20
      %v1120 = vpop.permute.xlu0 %1119
      %1121 = vrot.lane.b32.xlu0 %v443, 20
      %v1122 = vpop.permute.xlu0 %1121
      %1123 = vrot.lane.b32.xlu0 %v444, 20
      %v1124 = vpop.permute.xlu0 %1123
      %1125 = vrot.lane.b32.xlu0 %v445, 20
      %v1126 = vpop.permute.xlu0 %1125
      %1127 = vrot.lane.b32.xlu0 %v446, 20
      %v1128 = vpop.permute.xlu0 %1127
      %1129 = vrot.lane.b32.xlu0 %v447, 20
      %v1130 = vpop.permute.xlu0 %1129
      %1131 = vrot.lane.b32.xlu0 %v448, 20
      %v1132 = vpop.permute.xlu0 %1131
      %1133 = vrot.lane.b32.xlu0 %v449, 20
      %v1134 = vpop.permute.xlu0 %1133
      %1135 = vrot.lane.b32.xlu0 %v450, 20
      %v1136 = vpop.permute.xlu0 %1135
      %1137 = vrot.lane.b32.xlu0 %v451, 20
      %v1138 = vpop.permute.xlu0 %1137
      %1139 = vrot.lane.b32.xlu0 %v452, 20
      %v1140 = vpop.permute.xlu0 %1139
      %1141 = vrot.lane.b32.xlu0 %v453, 20
      %v1142 = vpop.permute.xlu0 %1141
      %1143 = vrot.lane.b32.xlu0 %v454, 20
      %v1144 = vpop.permute.xlu0 %1143
      %1145 = vrot.lane.b32.xlu0 %v455, 20
      %v1146 = vpop.permute.xlu0 %1145
      %1147 = vrot.lane.b32.xlu0 %v456, 20
      %v1148 = vpop.permute.xlu0 %1147
      %1149 = vrot.lane.b32.xlu0 %v457, 20
      %v1150 = vpop.permute.xlu0 %1149
      %1151 = vrot.lane.b32.xlu0 %v458, 20
      %v1152 = vpop.permute.xlu0 %1151
      %1153 = vrot.lane.b32.xlu0 %v459, 20
      %v1154 = vpop.permute.xlu0 %1153
      %1155 = vrot.lane.b32.xlu0 %v460, 20
      %v1156 = vpop.permute.xlu0 %1155
      %1157 = vrot.lane.b32.xlu0 %v461, 20
      %v1158 = vpop.permute.xlu0 %1157
      %1159 = vrot.lane.b32.xlu0 %v462, 20
      %v1160 = vpop.permute.xlu0 %1159
      %1161 = vrot.lane.b32.xlu0 %v463, 20
      %v1162 = vpop.permute.xlu0 %1161
      %1163 = vrot.lane.b32.xlu0 %v464, 20
      %v1164 = vpop.permute.xlu0 %1163
      %1165 = vrot.lane.b32.xlu0 %v465, 20
      %v1166 = vpop.permute.xlu0 %1165
      %1167 = vrot.lane.b32.xlu0 %v466, 20
      %v1168 = vpop.permute.xlu0 %1167
      %1169 = vrot.lane.b32.xlu0 %v467, 20
      %v1170 = vpop.permute.xlu0 %1169
      %1171 = vrot.lane.b32.xlu0 %v468, 20
      %v1172 = vpop.permute.xlu0 %1171
      %1173 = vrot.lane.b32.xlu0 %v469, 20
      %v1174 = vpop.permute.xlu0 %1173
      %1239 = vrot.lane.b32.xlu0 %v471, 24
      %v1240 = vpop.permute.xlu0 %1239
      %1241 = vrot.lane.b32.xlu0 %v472, 24
      %v1242 = vpop.permute.xlu0 %1241
      %1243 = vrot.lane.b32.xlu0 %v473, 24
      %v1244 = vpop.permute.xlu0 %1243
      %1245 = vrot.lane.b32.xlu0 %v474, 24
      %v1246 = vpop.permute.xlu0 %1245
      %1247 = vrot.lane.b32.xlu0 %v475, 24
      %v1248 = vpop.permute.xlu0 %1247
      %1249 = vrot.lane.b32.xlu0 %v476, 24
      %v1250 = vpop.permute.xlu0 %1249
      %1251 = vrot.lane.b32.xlu0 %v477, 24
      %v1252 = vpop.permute.xlu0 %1251
      %1253 = vrot.lane.b32.xlu0 %v478, 24
      %v1254 = vpop.permute.xlu0 %1253
      %1255 = vrot.lane.b32.xlu0 %v479, 24
      %v1256 = vpop.permute.xlu0 %1255
      %1257 = vrot.lane.b32.xlu0 %v480, 24
      %v1258 = vpop.permute.xlu0 %1257
      %1259 = vrot.lane.b32.xlu0 %v481, 24
      %v1260 = vpop.permute.xlu0 %1259
      %1261 = vrot.lane.b32.xlu0 %v482, 24
      %v1262 = vpop.permute.xlu0 %1261
      %1263 = vrot.lane.b32.xlu0 %v483, 24
      %v1264 = vpop.permute.xlu0 %1263
      %1265 = vrot.lane.b32.xlu0 %v484, 24
      %v1266 = vpop.permute.xlu0 %1265
      %1267 = vrot.lane.b32.xlu0 %v485, 24
      %v1268 = vpop.permute.xlu0 %1267
      %1269 = vrot.lane.b32.xlu0 %v486, 24
      %v1270 = vpop.permute.xlu0 %1269
      %1271 = vrot.lane.b32.xlu0 %v487, 24
      %v1272 = vpop.permute.xlu0 %1271
      %1273 = vrot.lane.b32.xlu0 %v488, 24
      %v1274 = vpop.permute.xlu0 %1273
      %1275 = vrot.lane.b32.xlu0 %v489, 24
      %v1276 = vpop.permute.xlu0 %1275
      %1277 = vrot.lane.b32.xlu0 %v490, 24
      %v1278 = vpop.permute.xlu0 %1277
      %1279 = vrot.lane.b32.xlu0 %v491, 24
      %v1280 = vpop.permute.xlu0 %1279
      %1281 = vrot.lane.b32.xlu0 %v492, 24
      %v1282 = vpop.permute.xlu0 %1281
      %1283 = vrot.lane.b32.xlu0 %v493, 24
      %v1284 = vpop.permute.xlu0 %1283
      %1285 = vrot.lane.b32.xlu0 %v494, 24
      %v1286 = vpop.permute.xlu0 %1285
      %1287 = vrot.lane.b32.xlu0 %v495, 24
      %v1288 = vpop.permute.xlu0 %1287
      %1289 = vrot.lane.b32.xlu0 %v496, 24
      %v1290 = vpop.permute.xlu0 %1289
      %1291 = vrot.lane.b32.xlu0 %v497, 24
      %v1292 = vpop.permute.xlu0 %1291
      %1293 = vrot.lane.b32.xlu0 %v498, 24
      %v1294 = vpop.permute.xlu0 %1293
      %1295 = vrot.lane.b32.xlu0 %v499, 24
      %v1296 = vpop.permute.xlu0 %1295
      %1297 = vrot.lane.b32.xlu0 %v500, 24
      %v1298 = vpop.permute.xlu0 %1297
      %1299 = vrot.lane.b32.xlu0 %v501, 24
      %v1300 = vpop.permute.xlu0 %1299
      %1301 = vrot.lane.b32.xlu0 %v502, 24
      %v1302 = vpop.permute.xlu0 %1301
      %1367 = vrot.lane.b32.xlu0 %v503, 28
      %v1368 = vpop.permute.xlu0 %1367
      %1369 = vrot.lane.b32.xlu0 %v504, 28
      %v1370 = vpop.permute.xlu0 %1369
      %1371 = vrot.lane.b32.xlu0 %v505, 28
      %v1372 = vpop.permute.xlu0 %1371
      %1373 = vrot.lane.b32.xlu0 %v506, 28
      %v1374 = vpop.permute.xlu0 %1373
      %1375 = vrot.lane.b32.xlu0 %v507, 28
      %v1376 = vpop.permute.xlu0 %1375
      %1377 = vrot.lane.b32.xlu0 %v508, 28
      %v1378 = vpop.permute.xlu0 %1377
      %1379 = vrot.lane.b32.xlu0 %v509, 28
      %v1380 = vpop.permute.xlu0 %1379
      %1381 = vrot.lane.b32.xlu0 %v510, 28
      %v1382 = vpop.permute.xlu0 %1381
      %1383 = vrot.lane.b32.xlu0 %v511, 28
      %v1384 = vpop.permute.xlu0 %1383
      %1385 = vrot.lane.b32.xlu0 %v512, 28
      %v1386 = vpop.permute.xlu0 %1385
      %1387 = vrot.lane.b32.xlu0 %v513, 28
      %v1388 = vpop.permute.xlu0 %1387
      %1389 = vrot.lane.b32.xlu0 %v514, 28
      %v1390 = vpop.permute.xlu0 %1389
      %1391 = vrot.lane.b32.xlu0 %v515, 28
      %v1392 = vpop.permute.xlu0 %1391
      %1393 = vrot.lane.b32.xlu0 %v516, 28
      %v1394 = vpop.permute.xlu0 %1393
      %1395 = vrot.lane.b32.xlu0 %v517, 28
      %v1396 = vpop.permute.xlu0 %1395
      %1397 = vrot.lane.b32.xlu0 %v518, 28
      %v1398 = vpop.permute.xlu0 %1397
      %1399 = vrot.lane.b32.xlu0 %v519, 28
      %v1400 = vpop.permute.xlu0 %1399
      %1401 = vrot.lane.b32.xlu0 %v520, 28
      %v1402 = vpop.permute.xlu0 %1401
      %1403 = vrot.lane.b32.xlu0 %v521, 28
      %v1404 = vpop.permute.xlu0 %1403
      %1405 = vrot.lane.b32.xlu0 %v522, 28
      %v1406 = vpop.permute.xlu0 %1405
      %1407 = vrot.lane.b32.xlu0 %v523, 28
      %v1408 = vpop.permute.xlu0 %1407
      %1409 = vrot.lane.b32.xlu0 %v524, 28
      %v1410 = vpop.permute.xlu0 %1409
      %1411 = vrot.lane.b32.xlu0 %v525, 28
      %v1412 = vpop.permute.xlu0 %1411
      %1413 = vrot.lane.b32.xlu0 %v526, 28
      %v1414 = vpop.permute.xlu0 %1413
      %1415 = vrot.lane.b32.xlu0 %v527, 28
      %v1416 = vpop.permute.xlu0 %1415
      %1417 = vrot.lane.b32.xlu0 %v528, 28
      %v1418 = vpop.permute.xlu0 %1417
      %1419 = vrot.lane.b32.xlu0 %v529, 28
      %v1420 = vpop.permute.xlu0 %1419
      %1421 = vrot.lane.b32.xlu0 %v530, 28
      %v1422 = vpop.permute.xlu0 %1421
      %1423 = vrot.lane.b32.xlu0 %v531, 28
      %v1424 = vpop.permute.xlu0 %1423
      %1425 = vrot.lane.b32.xlu0 %v532, 28
      %v1426 = vpop.permute.xlu0 %1425
      %1427 = vrot.lane.b32.xlu0 %v533, 28
      %v1428 = vpop.permute.xlu0 %1427
      %1429 = vrot.lane.b32.xlu0 %v534, 28
      %v1430 = vpop.permute.xlu0 %1429
      %1495 = vrot.lane.b32.xlu0 %v535, 32
      %v1496 = vpop.permute.xlu0 %1495
      %1497 = vrot.lane.b32.xlu0 %v536, 32
      %v1498 = vpop.permute.xlu0 %1497
      %1499 = vrot.lane.b32.xlu0 %v537, 32
      %v1500 = vpop.permute.xlu0 %1499
      %1501 = vrot.lane.b32.xlu0 %v538, 32
      %v1502 = vpop.permute.xlu0 %1501
      %1503 = vrot.lane.b32.xlu0 %v539, 32
      %v1504 = vpop.permute.xlu0 %1503
      %1505 = vrot.lane.b32.xlu0 %v540, 32
      %v1506 = vpop.permute.xlu0 %1505
      %1507 = vrot.lane.b32.xlu0 %v541, 32
      %v1508 = vpop.permute.xlu0 %1507
      %1509 = vrot.lane.b32.xlu0 %v542, 32
      %v1510 = vpop.permute.xlu0 %1509
      %1511 = vrot.lane.b32.xlu0 %v543, 32
      %v1512 = vpop.permute.xlu0 %1511
      %1513 = vrot.lane.b32.xlu0 %v544, 32
      %v1514 = vpop.permute.xlu0 %1513
      %1515 = vrot.lane.b32.xlu0 %v545, 32
      %v1516 = vpop.permute.xlu0 %1515
      %1517 = vrot.lane.b32.xlu0 %v546, 32
      %v1518 = vpop.permute.xlu0 %1517
      %1519 = vrot.lane.b32.xlu0 %v547, 32
      %v1520 = vpop.permute.xlu0 %1519
      %1521 = vrot.lane.b32.xlu0 %v548, 32
      %v1522 = vpop.permute.xlu0 %1521
      %1523 = vrot.lane.b32.xlu0 %v549, 32
      %v1524 = vpop.permute.xlu0 %1523
      %1525 = vrot.lane.b32.xlu0 %v550, 32
      %v1526 = vpop.permute.xlu0 %1525
      %1527 = vrot.lane.b32.xlu0 %v551, 32
      %v1528 = vpop.permute.xlu0 %1527
      %1529 = vrot.lane.b32.xlu0 %v552, 32
      %v1530 = vpop.permute.xlu0 %1529
      %1531 = vrot.lane.b32.xlu0 %v553, 32
      %v1532 = vpop.permute.xlu0 %1531
      %1533 = vrot.lane.b32.xlu0 %v554, 32
      %v1534 = vpop.permute.xlu0 %1533
      %1535 = vrot.lane.b32.xlu0 %v555, 32
      %v1536 = vpop.permute.xlu0 %1535
      %1537 = vrot.lane.b32.xlu0 %v556, 32
      %v1538 = vpop.permute.xlu0 %1537
      %1539 = vrot.lane.b32.xlu0 %v557, 32
      %v1540 = vpop.permute.xlu0 %1539
      %1541 = vrot.lane.b32.xlu0 %v558, 32
      %v1542 = vpop.permute.xlu0 %1541
      %1543 = vrot.lane.b32.xlu0 %v559, 32
      %v1544 = vpop.permute.xlu0 %1543
      %1545 = vrot.lane.b32.xlu0 %v560, 32
      %v1546 = vpop.permute.xlu0 %1545
      %1547 = vrot.lane.b32.xlu0 %v561, 32
      %v1548 = vpop.permute.xlu0 %1547
      %1549 = vrot.lane.b32.xlu0 %v562, 32
      %v1550 = vpop.permute.xlu0 %1549
      %1551 = vrot.lane.b32.xlu0 %v563, 32
      %v1552 = vpop.permute.xlu0 %1551
      %1553 = vrot.lane.b32.xlu0 %v564, 32
      %v1554 = vpop.permute.xlu0 %1553
      %1555 = vrot.lane.b32.xlu0 %v565, 32
      %v1556 = vpop.permute.xlu0 %1555
      %1557 = vrot.lane.b32.xlu0 %v566, 32
      %v1558 = vpop.permute.xlu0 %1557
      %v1591 = vsel %vm171, %v278, %v600
      %v1592 = vsel %vm171, %v279, %v602
      %v1593 = vsel %vm171, %v280, %v604
      %v1594 = vsel %vm171, %v281, %v606
      %v1595 = vsel %vm171, %v282, %v608
      %v1596 = vsel %vm171, %v283, %v610
      %v1597 = vsel %vm171, %v284, %v612
      %v1598 = vsel %vm171, %v285, %v614
      %v1599 = vsel %vm171, %v286, %v616
      %v1600 = vsel %vm171, %v287, %v618
      %v1601 = vsel %vm171, %v288, %v620
      %v1602 = vsel %vm171, %v289, %v622
      %v1603 = vsel %vm171, %v290, %v624
      %v1604 = vsel %vm171, %v291, %v626
      %v1605 = vsel %vm171, %v292, %v628
      %v1606 = vsel %vm171, %v293, %v630
      %v1607 = vsel %vm171, %v294, %v632
      %v1608 = vsel %vm171, %v295, %v634
      %v1609 = vsel %vm171, %v296, %v636
      %v1610 = vsel %vm171, %v297, %v638
      %v1611 = vsel %vm171, %v298, %v640
      %v1612 = vsel %vm171, %v299, %v642
      %v1613 = vsel %vm171, %v300, %v644
      %v1614 = vsel %vm171, %v301, %v646
      %v1615 = vsel %vm171, %v302, %v648
      %v1616 = vsel %vm171, %v303, %v650
      %v1617 = vsel %vm171, %v304, %v652
      %v1618 = vsel %vm171, %v305, %v654
      %v1619 = vsel %vm171, %v306, %v656
      %v1620 = vsel %vm171, %v307, %v658
      %v1621 = vsel %vm171, %v308, %v660
      %v1622 = vsel %vm171, %v309, %v662
      %vm1623 = vcmask 64512
      %v1624 = vsel %vm1623, %v1591, %v728
      %v1625 = vsel %vm1623, %v1592, %v730
      %v1626 = vsel %vm1623, %v1593, %v732
      %v1627 = vsel %vm1623, %v1594, %v734
      %v1628 = vsel %vm1623, %v1595, %v736
      %v1629 = vsel %vm1623, %v1596, %v738
      %v1630 = vsel %vm1623, %v1597, %v740
      %v1631 = vsel %vm1623, %v1598, %v742
      %v1632 = vsel %vm1623, %v1599, %v744
      %v1633 = vsel %vm1623, %v1600, %v746
      %v1634 = vsel %vm1623, %v1601, %v748
      %v1635 = vsel %vm1623, %v1602, %v750
      %v1636 = vsel %vm1623, %v1603, %v752
      %v1637 = vsel %vm1623, %v1604, %v754
      %v1638 = vsel %vm1623, %v1605, %v756
      %v1639 = vsel %vm1623, %v1606, %v758
      %v1640 = vsel %vm1623, %v1607, %v760
      %v1641 = vsel %vm1623, %v1608, %v762
      %v1642 = vsel %vm1623, %v1609, %v764
      %v1643 = vsel %vm1623, %v1610, %v766
      %v1644 = vsel %vm1623, %v1611, %v768
      %v1645 = vsel %vm1623, %v1612, %v770
      %v1646 = vsel %vm1623, %v1613, %v772
      %v1647 = vsel %vm1623, %v1614, %v774
      %v1648 = vsel %vm1623, %v1615, %v776
      %v1649 = vsel %vm1623, %v1616, %v778
      %v1650 = vsel %vm1623, %v1617, %v780
      %v1651 = vsel %vm1623, %v1618, %v782
      %v1652 = vsel %vm1623, %v1619, %v784
      %v1653 = vsel %vm1623, %v1620, %v786
      %v1654 = vsel %vm1623, %v1621, %v788
      %v1655 = vsel %vm1623, %v1622, %v790
      %vm1656 = vcmask 97280
      %v1657 = vsel %vm1656, %v1624, %v856
      %v1658 = vsel %vm1656, %v1625, %v858
      %v1659 = vsel %vm1656, %v1626, %v860
      %v1660 = vsel %vm1656, %v1627, %v862
      %v1661 = vsel %vm1656, %v1628, %v864
      %v1662 = vsel %vm1656, %v1629, %v866
      %v1663 = vsel %vm1656, %v1630, %v868
      %v1664 = vsel %vm1656, %v1631, %v870
      %v1665 = vsel %vm1656, %v1632, %v872
      %v1666 = vsel %vm1656, %v1633, %v874
      %v1667 = vsel %vm1656, %v1634, %v876
      %v1668 = vsel %vm1656, %v1635, %v878
      %v1669 = vsel %vm1656, %v1636, %v880
      %v1670 = vsel %vm1656, %v1637, %v882
      %v1671 = vsel %vm1656, %v1638, %v884
      %v1672 = vsel %vm1656, %v1639, %v886
      %v1673 = vsel %vm1656, %v1640, %v888
      %v1674 = vsel %vm1656, %v1641, %v890
      %v1675 = vsel %vm1656, %v1642, %v892
      %v1676 = vsel %vm1656, %v1643, %v894
      %v1677 = vsel %vm1656, %v1644, %v896
      %v1678 = vsel %vm1656, %v1645, %v898
      %v1679 = vsel %vm1656, %v1646, %v900
      %v1680 = vsel %vm1656, %v1647, %v902
      %v1681 = vsel %vm1656, %v1648, %v904
      %v1682 = vsel %vm1656, %v1649, %v906
      %v1683 = vsel %vm1656, %v1650, %v908
      %v1684 = vsel %vm1656, %v1651, %v910
      %v1685 = vsel %vm1656, %v1652, %v912
      %v1686 = vsel %vm1656, %v1653, %v914
      %v1687 = vsel %vm1656, %v1654, %v916
      %v1688 = vsel %vm1656, %v1655, %v918
      %vm1689 = vcmask 130048
      %v1690 = vsel %vm1689, %v1657, %v984
      %v1691 = vsel %vm1689, %v1658, %v986
      %v1692 = vsel %vm1689, %v1659, %v988
      %v1693 = vsel %vm1689, %v1660, %v990
      %v1694 = vsel %vm1689, %v1661, %v992
      %v1695 = vsel %vm1689, %v1662, %v994
      %v1696 = vsel %vm1689, %v1663, %v996
      %v1697 = vsel %vm1689, %v1664, %v998
      %v1698 = vsel %vm1689, %v1665, %v1000
      %v1699 = vsel %vm1689, %v1666, %v1002
      %v1700 = vsel %vm1689, %v1667, %v1004
      %v1701 = vsel %vm1689, %v1668, %v1006
      %v1702 = vsel %vm1689, %v1669, %v1008
      %v1703 = vsel %vm1689, %v1670, %v1010
      %v1704 = vsel %vm1689, %v1671, %v1012
      %v1705 = vsel %vm1689, %v1672, %v1014
      %v1706 = vsel %vm1689, %v1673, %v1016
      %v1707 = vsel %vm1689, %v1674, %v1018
      %v1708 = vsel %vm1689, %v1675, %v1020
      %v1709 = vsel %vm1689, %v1676, %v1022
      %v1710 = vsel %vm1689, %v1677, %v1024
      %v1711 = vsel %vm1689, %v1678, %v1026
      %v1712 = vsel %vm1689, %v1679, %v1028
      %v1713 = vsel %vm1689, %v1680, %v1030
      %v1714 = vsel %vm1689, %v1681, %v1032
      %v1715 = vsel %vm1689, %v1682, %v1034
      %v1716 = vsel %vm1689, %v1683, %v1036
      %v1717 = vsel %vm1689, %v1684, %v1038
      %v1718 = vsel %vm1689, %v1685, %v1040
      %v1719 = vsel %vm1689, %v1686, %v1042
      %v1720 = vsel %vm1689, %v1687, %v1044
      %v1721 = vsel %vm1689, %v1688, %v1046
      %vm1722 = vcmask 162816
      %v1723 = vsel %vm1722, %v1690, %v1112
      %v1724 = vsel %vm1722, %v1691, %v1114
      %v1725 = vsel %vm1722, %v1692, %v1116
      %v1726 = vsel %vm1722, %v1693, %v1118
      %v1727 = vsel %vm1722, %v1694, %v1120
      %v1728 = vsel %vm1722, %v1695, %v1122
      %v1729 = vsel %vm1722, %v1696, %v1124
      %v1730 = vsel %vm1722, %v1697, %v1126
      %v1731 = vsel %vm1722, %v1698, %v1128
      %v1732 = vsel %vm1722, %v1699, %v1130
      %v1733 = vsel %vm1722, %v1700, %v1132
      %v1734 = vsel %vm1722, %v1701, %v1134
      %v1735 = vsel %vm1722, %v1702, %v1136
      %v1736 = vsel %vm1722, %v1703, %v1138
      %v1737 = vsel %vm1722, %v1704, %v1140
      %v1738 = vsel %vm1722, %v1705, %v1142
      %v1739 = vsel %vm1722, %v1706, %v1144
      %v1740 = vsel %vm1722, %v1707, %v1146
      %v1741 = vsel %vm1722, %v1708, %v1148
      %v1742 = vsel %vm1722, %v1709, %v1150
      %v1743 = vsel %vm1722, %v1710, %v1152
      %v1744 = vsel %vm1722, %v1711, %v1154
      %v1745 = vsel %vm1722, %v1712, %v1156
      %v1746 = vsel %vm1722, %v1713, %v1158
      %v1747 = vsel %vm1722, %v1714, %v1160
      %v1748 = vsel %vm1722, %v1715, %v1162
      %v1749 = vsel %vm1722, %v1716, %v1164
      %v1750 = vsel %vm1722, %v1717, %v1166
      %v1751 = vsel %vm1722, %v1718, %v1168
      %v1752 = vsel %vm1722, %v1719, %v1170
      %v1753 = vsel %vm1722, %v1720, %v1172
      %v1754 = vsel %vm1722, %v1721, %v1174
      %vm1755 = vcmask 195584
      %v1756 = vsel %vm1755, %v1723, %v1240
      %v1757 = vsel %vm1755, %v1724, %v1242
      %v1758 = vsel %vm1755, %v1725, %v1244
      %v1759 = vsel %vm1755, %v1726, %v1246
      %v1760 = vsel %vm1755, %v1727, %v1248
      %v1761 = vsel %vm1755, %v1728, %v1250
      %v1762 = vsel %vm1755, %v1729, %v1252
      %v1763 = vsel %vm1755, %v1730, %v1254
      %v1764 = vsel %vm1755, %v1731, %v1256
      %v1765 = vsel %vm1755, %v1732, %v1258
      %v1766 = vsel %vm1755, %v1733, %v1260
      %v1767 = vsel %vm1755, %v1734, %v1262
      %v1768 = vsel %vm1755, %v1735, %v1264
      %v1769 = vsel %vm1755, %v1736, %v1266
      %v1770 = vsel %vm1755, %v1737, %v1268
      %v1771 = vsel %vm1755, %v1738, %v1270
      %v1772 = vsel %vm1755, %v1739, %v1272
      %v1773 = vsel %vm1755, %v1740, %v1274
      %v1774 = vsel %vm1755, %v1741, %v1276
      %v1775 = vsel %vm1755, %v1742, %v1278
      %v1776 = vsel %vm1755, %v1743, %v1280
      %v1777 = vsel %vm1755, %v1744, %v1282
      %v1778 = vsel %vm1755, %v1745, %v1284
      %v1779 = vsel %vm1755, %v1746, %v1286
      %v1780 = vsel %vm1755, %v1747, %v1288
      %v1781 = vsel %vm1755, %v1748, %v1290
      %v1782 = vsel %vm1755, %v1749, %v1292
      %v1783 = vsel %vm1755, %v1750, %v1294
      %v1784 = vsel %vm1755, %v1751, %v1296
      %v1785 = vsel %vm1755, %v1752, %v1298
      %v1786 = vsel %vm1755, %v1753, %v1300
      %v1787 = vsel %vm1755, %v1754, %v1302
      %vm1788 = vcmask 228352
      %v1789 = vsel %vm1788, %v1756, %v1368
      %v1790 = vsel %vm1788, %v1757, %v1370
      %v1791 = vsel %vm1788, %v1758, %v1372
      %v1792 = vsel %vm1788, %v1759, %v1374
      %v1793 = vsel %vm1788, %v1760, %v1376
      %v1794 = vsel %vm1788, %v1761, %v1378
      %v1795 = vsel %vm1788, %v1762, %v1380
      %v1796 = vsel %vm1788, %v1763, %v1382
      %v1797 = vsel %vm1788, %v1764, %v1384
      %v1798 = vsel %vm1788, %v1765, %v1386
      %v1799 = vsel %vm1788, %v1766, %v1388
      %v1800 = vsel %vm1788, %v1767, %v1390
      %v1801 = vsel %vm1788, %v1768, %v1392
      %v1802 = vsel %vm1788, %v1769, %v1394
      %v1803 = vsel %vm1788, %v1770, %v1396
      %v1804 = vsel %vm1788, %v1771, %v1398
      %v1805 = vsel %vm1788, %v1772, %v1400
      %v1806 = vsel %vm1788, %v1773, %v1402
      %v1807 = vsel %vm1788, %v1774, %v1404
      %v1808 = vsel %vm1788, %v1775, %v1406
      %v1809 = vsel %vm1788, %v1776, %v1408
      %v1810 = vsel %vm1788, %v1777, %v1410
      %v1811 = vsel %vm1788, %v1778, %v1412
      %v1812 = vsel %vm1788, %v1779, %v1414
      %v1813 = vsel %vm1788, %v1780, %v1416
      %v1814 = vsel %vm1788, %v1781, %v1418
      %v1815 = vsel %vm1788, %v1782, %v1420
      %v1816 = vsel %vm1788, %v1783, %v1422
      %v1817 = vsel %vm1788, %v1784, %v1424
      %v1818 = vsel %vm1788, %v1785, %v1426
      %v1819 = vsel %vm1788, %v1786, %v1428
      %v1820 = vsel %vm1788, %v1787, %v1430
      %vm1821 = vcmask 261120
      %v1822 = vsel %vm1821, %v1789, %v1496
      %v1823 = vsel %vm1821, %v1790, %v1498
      %v1824 = vsel %vm1821, %v1791, %v1500
      %v1825 = vsel %vm1821, %v1792, %v1502
      %v1826 = vsel %vm1821, %v1793, %v1504
      %v1827 = vsel %vm1821, %v1794, %v1506
      %v1828 = vsel %vm1821, %v1795, %v1508
      %v1829 = vsel %vm1821, %v1796, %v1510
      %v1830 = vsel %vm1821, %v1797, %v1512
      %v1831 = vsel %vm1821, %v1798, %v1514
      %v1832 = vsel %vm1821, %v1799, %v1516
      %v1833 = vsel %vm1821, %v1800, %v1518
      %v1834 = vsel %vm1821, %v1801, %v1520
      %v1835 = vsel %vm1821, %v1802, %v1522
      %v1836 = vsel %vm1821, %v1803, %v1524
      %v1837 = vsel %vm1821, %v1804, %v1526
      %v1838 = vsel %vm1821, %v1805, %v1528
      %v1839 = vsel %vm1821, %v1806, %v1530
      %v1840 = vsel %vm1821, %v1807, %v1532
      %v1841 = vsel %vm1821, %v1808, %v1534
      %v1842 = vsel %vm1821, %v1809, %v1536
      %v1843 = vsel %vm1821, %v1810, %v1538
      %v1844 = vsel %vm1821, %v1811, %v1540
      %v1845 = vsel %vm1821, %v1812, %v1542
      %v1846 = vsel %vm1821, %v1813, %v1544
      %v1847 = vsel %vm1821, %v1814, %v1546
      %v1848 = vsel %vm1821, %v1815, %v1548
      %v1849 = vsel %vm1821, %v1816, %v1550
      %v1850 = vsel %vm1821, %v1817, %v1552
      %v1851 = vsel %vm1821, %v1818, %v1554
      %v1852 = vsel %vm1821, %v1819, %v1556
      %v1853 = vsel %vm1821, %v1820, %v1558
      %v1854 = vld [vmem:[%s1] sm:$0xff]
      %v1855 = vld [vmem:[%s1 + $0x8] sm:$0xff]
      %v1856 = vld [vmem:[%s1 + $0x10] sm:$0xff]
      %v1857 = vld [vmem:[%s1 + $0x18] sm:$0xff]
      %v1858 = vld [vmem:[%s1 + $0x20] sm:$0xf]
      %v1859 = vld [vmem:[%s2] sm:$0x1]
      %v1861 = vlaneseq
      %v1862 = vshrl.u32 %v1861, 7
      %v1863 = vsub.s32 0, %v1862
      %v1864 = vrot.slane %v1859, %v1863
      %vm1866 = vcmask 293888
      %v1868 = vsel %vm1866, %v1822, 0
      %v1871 = vsel %vm1866, %v1823, 0
      %v1874 = vsel %vm1866, %v1824, 0
      %v1877 = vsel %vm1866, %v1825, 0
      %v1880 = vsel %vm1866, %v1826, 0
      %v1883 = vsel %vm1866, %v1827, 0
      %v1886 = vsel %vm1866, %v1828, 0
      %v1889 = vsel %vm1866, %v1829, 0
      %v1892 = vsel %vm1866, %v1830, 0
      %v1895 = vsel %vm1866, %v1831, 0
      %v1898 = vsel %vm1866, %v1832, 0
      %v1901 = vsel %vm1866, %v1833, 0
      %v1904 = vsel %vm1866, %v1834, 0
      %v1907 = vsel %vm1866, %v1835, 0
      %v1910 = vsel %vm1866, %v1836, 0
      %v1913 = vsel %vm1866, %v1837, 0
      %v1916 = vsel %vm1866, %v1838, 0
      %v1919 = vsel %vm1866, %v1839, 0
      %v1922 = vsel %vm1866, %v1840, 0
      %v1925 = vsel %vm1866, %v1841, 0
      %v1928 = vsel %vm1866, %v1842, 0
      %v1931 = vsel %vm1866, %v1843, 0
      %v1934 = vsel %vm1866, %v1844, 0
      %v1937 = vsel %vm1866, %v1845, 0
      %v1940 = vsel %vm1866, %v1846, 0
      %v1943 = vsel %vm1866, %v1847, 0
      %v1946 = vsel %vm1866, %v1848, 0
      %v1949 = vsel %vm1866, %v1849, 0
      %v1952 = vsel %vm1866, %v1850, 0
      %v1955 = vsel %vm1866, %v1851, 0
      %v1958 = vsel %vm1866, %v1852, 0
      %v1961 = vsel %vm1866, %v1853, 0
      %vm1963 = vcmask 1043456
      %v1965 = vsel %vm1963, %v1858, 0
      %1967 = vmatprep.subr.mxu0 0.0
      %1968 = vmatpush1.msra.mxu0 %v1854
      %1969 = vmatprep.subr.mxu0 0.0
      %1970 = vmatpush1.msra.mxu0 %v1855
      %1971 = vmatprep.subr.mxu0 0.0
      %1972 = vmatpush1.msra.mxu0 %v1856
      %1973 = vmatprep.subr.mxu0 0.0
      %1974 = vmatpush1.msra.mxu0 %v1857
      %1975 = vmatprep.subr.mxu0 0.0
      %1976 = vmatpush1.msra.mxu0 %v1965
      %1977 = vmatprep.subr.mxu0 0.0
      %1978 = vmatpush1.msra.mxu0 0.0
      %1979 = vmatprep.subr.mxu0 0.0
      %1980 = vmatpush1.msra.mxu0 0.0
      %1981 = vmatprep.subr.mxu0 0.0
      %1982 = vmatpush1.msra.mxu0 0.0
      %1983 = vmatprep.subr.mxu0 0.0
      %1984 = vmatpush1.msra.mxu0 0.0
      %1985 = vmatprep.subr.mxu0 0.0
      %1986 = vmatpush1.msra.mxu0 0.0
      %1987 = vmatprep.subr.mxu0 0.0
      %1988 = vmatpush1.msra.mxu0 0.0
      %1989 = vmatprep.subr.mxu0 0.0
      %1990 = vmatpush1.msra.mxu0 0.0
      %1991 = vmatprep.subr.mxu0 0.0
      %1992 = vmatpush1.msra.mxu0 0.0
      %1993 = vmatprep.subr.mxu0 0.0
      %1994 = vmatpush1.msra.mxu0 0.0
      %1995 = vmatprep.subr.mxu0 0.0
      %1996 = vmatpush1.msra.mxu0 0.0
      %1997 = vmatprep.subr.mxu0 0.0
      %1998 = vmatpush1.msra.mxu0 0.0
      %1999 = vmatprep.subr.mxu0 0.0
      %2000 = vmatpush1.msra.mxu0 0.0
      %2001 = vmatprep.subr.mxu0 0.0
      %2002 = vmatpush1.msra.mxu0 0.0
      %2003 = vmatprep.subr.mxu0 0.0
      %2004 = vmatpush1.msra.mxu0 0.0
      %2005 = vmatprep.subr.mxu0 0.0
      %2006 = vmatpush1.msra.mxu0 0.0
      %2007 = vmatprep.subr.mxu0 0.0
      %2008 = vmatpush1.msra.mxu0 0.0
      %2009 = vmatprep.subr.mxu0 0.0
      %2010 = vmatpush1.msra.mxu0 0.0
      %2011 = vmatprep.subr.mxu0 0.0
      %2012 = vmatpush1.msra.mxu0 0.0
      %2013 = vmatprep.subr.mxu0 0.0
      %2014 = vmatpush1.msra.mxu0 0.0
      %2015 = vmatprep.subr.mxu0 0.0
      %2016 = vmatpush1.msra.mxu0 0.0
      %2017 = vmatprep.subr.mxu0 0.0
      %2018 = vmatpush1.msra.mxu0 0.0
      %2019 = vmatprep.subr.mxu0 0.0
      %2020 = vmatpush1.msra.mxu0 0.0
      %2021 = vmatprep.subr.mxu0 0.0
      %2022 = vmatpush1.msra.mxu0 0.0
      %2023 = vmatprep.subr.mxu0 0.0
      %2024 = vmatpush1.msra.mxu0 0.0
      %2025 = vmatprep.subr.mxu0 0.0
      %2026 = vmatpush1.msra.mxu0 0.0
      %2027 = vmatprep.subr.mxu0 0.0
      %2028 = vmatpush1.msra.mxu0 0.0
      %2029 = vmatprep.subr.mxu0 0.0
      %2030 = vmatpush1.msra.mxu0 0.0
      %2031 = vmatprep.mubr.f32.mxu0 0.0
      %2032 = vmatmul.mubr.f32.gmra.mrb[0].mxu0 %v1868
      %v2033 = vpop.f32.mrb[0].mxu0
      %v2034 = vadd.f32 %v1864, %v2033
      %v2035 = vpop.f32.mrb[0].mxu0
      %2036 = vmatprep.mubr.f32.mxu0 0.0
      %2037 = vmatmul.mubr.f32.gmra.mrb[0].mxu0 %v1871
      %v2038 = vpop.f32.mrb[0].mxu0
      %v2039 = vadd.f32 %v1864, %v2038
      %v2040 = vpop.f32.mrb[0].mxu0
      %2041 = vmatprep.mubr.f32.mxu0 0.0
      %2042 = vmatmul.mubr.f32.gmra.mrb[0].mxu0 %v1874
      %v2043 = vpop.f32.mrb[0].mxu0
      %v2044 = vadd.f32 %v1864, %v2043
      %v2045 = vpop.f32.mrb[0].mxu0
      %2046 = vmatprep.mubr.f32.mxu0 0.0
      %2047 = vmatmul.mubr.f32.gmra.mrb[0].mxu0 %v1877
      %v2048 = vpop.f32.mrb[0].mxu0
      %v2049 = vadd.f32 %v1864, %v2048
      %v2050 = vpop.f32.mrb[0].mxu0
      %2051 = vmatprep.mubr.f32.mxu0 0.0
      %2052 = vmatmul.mubr.f32.gmra.mrb[0].mxu0 %v1880
      %v2053 = vpop.f32.mrb[0].mxu0
      %v2054 = vadd.f32 %v1864, %v2053
      %v2055 = vpop.f32.mrb[0].mxu0
      %2056 = vmatprep.mubr.f32.mxu0 0.0
      %2057 = vmatmul.mubr.f32.gmra.mrb[0].mxu0 %v1883
      %v2058 = vpop.f32.mrb[0].mxu0
      %v2059 = vadd.f32 %v1864, %v2058
      %v2060 = vpop.f32.mrb[0].mxu0
      %2061 = vmatprep.mubr.f32.mxu0 0.0
      %2062 = vmatmul.mubr.f32.gmra.mrb[0].mxu0 %v1886
      %v2063 = vpop.f32.mrb[0].mxu0
      %v2064 = vadd.f32 %v1864, %v2063
      %v2065 = vpop.f32.mrb[0].mxu0
      %2066 = vmatprep.mubr.f32.mxu0 0.0
      %2067 = vmatmul.mubr.f32.gmra.mrb[0].mxu0 %v1889
      %v2068 = vpop.f32.mrb[0].mxu0
      %v2069 = vadd.f32 %v1864, %v2068
      %v2070 = vpop.f32.mrb[0].mxu0
      %2071 = vmatprep.mubr.f32.mxu0 0.0
      %2072 = vmatmul.mubr.f32.gmra.mrb[0].mxu0 %v1892
      %v2073 = vpop.f32.mrb[0].mxu0
      %v2074 = vadd.f32 %v1864, %v2073
      %v2075 = vpop.f32.mrb[0].mxu0
      %2076 = vmatprep.mubr.f32.mxu0 0.0
      %2077 = vmatmul.mubr.f32.gmra.mrb[0].mxu0 %v1895
      %v2078 = vpop.f32.mrb[0].mxu0
      %v2079 = vadd.f32 %v1864, %v2078
      %v2080 = vpop.f32.mrb[0].mxu0
      %2081 = vmatprep.mubr.f32.mxu0 0.0
      %2082 = vmatmul.mubr.f32.gmra.mrb[0].mxu0 %v1898
      %v2083 = vpop.f32.mrb[0].mxu0
      %v2084 = vadd.f32 %v1864, %v2083
      %v2085 = vpop.f32.mrb[0].mxu0
      %2086 = vmatprep.mubr.f32.mxu0 0.0
      %2087 = vmatmul.mubr.f32.gmra.mrb[0].mxu0 %v1901
      %v2088 = vpop.f32.mrb[0].mxu0
      %v2089 = vadd.f32 %v1864, %v2088
      %v2090 = vpop.f32.mrb[0].mxu0
      %2091 = vmatprep.mubr.f32.mxu0 0.0
      %2092 = vmatmul.mubr.f32.gmra.mrb[0].mxu0 %v1904
      %v2093 = vpop.f32.mrb[0].mxu0
      %v2094 = vadd.f32 %v1864, %v2093
      %v2095 = vpop.f32.mrb[0].mxu0
      %2096 = vmatprep.mubr.f32.mxu0 0.0
      %2097 = vmatmul.mubr.f32.gmra.mrb[0].mxu0 %v1907
      %v2098 = vpop.f32.mrb[0].mxu0
      %v2099 = vadd.f32 %v1864, %v2098
      %v2100 = vpop.f32.mrb[0].mxu0
      %2101 = vmatprep.mubr.f32.mxu0 0.0
      %2102 = vmatmul.mubr.f32.gmra.mrb[0].mxu0 %v1910
      %v2103 = vpop.f32.mrb[0].mxu0
      %v2104 = vadd.f32 %v1864, %v2103
      %v2105 = vpop.f32.mrb[0].mxu0
      %2106 = vmatprep.mubr.f32.mxu0 0.0
      %2107 = vmatmul.mubr.f32.gmra.mrb[0].mxu0 %v1913
      %v2108 = vpop.f32.mrb[0].mxu0
      %v2109 = vadd.f32 %v1864, %v2108
      %v2110 = vpop.f32.mrb[0].mxu0
      %2111 = vmatprep.mubr.f32.mxu0 0.0
      %2112 = vmatmul.mubr.f32.gmra.mrb[0].mxu0 %v1916
      %v2113 = vpop.f32.mrb[0].mxu0
      %v2114 = vadd.f32 %v1864, %v2113
      %v2115 = vpop.f32.mrb[0].mxu0
      %2116 = vmatprep.mubr.f32.mxu0 0.0
      %2117 = vmatmul.mubr.f32.gmra.mrb[0].mxu0 %v1919
      %v2118 = vpop.f32.mrb[0].mxu0
      %v2119 = vadd.f32 %v1864, %v2118
      %v2120 = vpop.f32.mrb[0].mxu0
      %2121 = vmatprep.mubr.f32.mxu0 0.0
      %2122 = vmatmul.mubr.f32.gmra.mrb[0].mxu0 %v1922
      %v2123 = vpop.f32.mrb[0].mxu0
      %v2124 = vadd.f32 %v1864, %v2123
      %v2125 = vpop.f32.mrb[0].mxu0
      %2126 = vmatprep.mubr.f32.mxu0 0.0
      %2127 = vmatmul.mubr.f32.gmra.mrb[0].mxu0 %v1925
      %v2128 = vpop.f32.mrb[0].mxu0
      %v2129 = vadd.f32 %v1864, %v2128
      %v2130 = vpop.f32.mrb[0].mxu0
      %2131 = vmatprep.mubr.f32.mxu0 0.0
      %2132 = vmatmul.mubr.f32.gmra.mrb[0].mxu0 %v1928
      %v2133 = vpop.f32.mrb[0].mxu0
      %v2134 = vadd.f32 %v1864, %v2133
      %v2135 = vpop.f32.mrb[0].mxu0
      %2136 = vmatprep.mubr.f32.mxu0 0.0
      %2137 = vmatmul.mubr.f32.gmra.mrb[0].mxu0 %v1931
      %v2138 = vpop.f32.mrb[0].mxu0
      %v2139 = vadd.f32 %v1864, %v2138
      %v2140 = vpop.f32.mrb[0].mxu0
      %2141 = vmatprep.mubr.f32.mxu0 0.0
      %2142 = vmatmul.mubr.f32.gmra.mrb[0].mxu0 %v1934
      %v2143 = vpop.f32.mrb[0].mxu0
      %v2144 = vadd.f32 %v1864, %v2143
      %v2145 = vpop.f32.mrb[0].mxu0
      %2146 = vmatprep.mubr.f32.mxu0 0.0
      %2147 = vmatmul.mubr.f32.gmra.mrb[0].mxu0 %v1937
      %v2148 = vpop.f32.mrb[0].mxu0
      %v2149 = vadd.f32 %v1864, %v2148
      %v2150 = vpop.f32.mrb[0].mxu0
      %2151 = vmatprep.mubr.f32.mxu0 0.0
      %2152 = vmatmul.mubr.f32.gmra.mrb[0].mxu0 %v1940
      %v2153 = vpop.f32.mrb[0].mxu0
      %v2154 = vadd.f32 %v1864, %v2153
      %v2155 = vpop.f32.mrb[0].mxu0
      %2156 = vmatprep.mubr.f32.mxu0 0.0
      %2157 = vmatmul.mubr.f32.gmra.mrb[0].mxu0 %v1943
      %v2158 = vpop.f32.mrb[0].mxu0
      %v2159 = vadd.f32 %v1864, %v2158
      %v2160 = vpop.f32.mrb[0].mxu0
      %2161 = vmatprep.mubr.f32.mxu0 0.0
      %2162 = vmatmul.mubr.f32.gmra.mrb[0].mxu0 %v1946
      %v2163 = vpop.f32.mrb[0].mxu0
      %v2164 = vadd.f32 %v1864, %v2163
      %v2165 = vpop.f32.mrb[0].mxu0
      %2166 = vmatprep.mubr.f32.mxu0 0.0
      %2167 = vmatmul.mubr.f32.gmra.mrb[0].mxu0 %v1949
      %v2168 = vpop.f32.mrb[0].mxu0
      %v2169 = vadd.f32 %v1864, %v2168
      %v2170 = vpop.f32.mrb[0].mxu0
      %2171 = vmatprep.mubr.f32.mxu0 0.0
      %2172 = vmatmul.mubr.f32.gmra.mrb[0].mxu0 %v1952
      %v2173 = vpop.f32.mrb[0].mxu0
      %v2174 = vadd.f32 %v1864, %v2173
      %v2175 = vpop.f32.mrb[0].mxu0
      %2176 = vmatprep.mubr.f32.mxu0 0.0
      %2177 = vmatmul.mubr.f32.gmra.mrb[0].mxu0 %v1955
      %v2178 = vpop.f32.mrb[0].mxu0
      %v2179 = vadd.f32 %v1864, %v2178
      %v2180 = vpop.f32.mrb[0].mxu0
      %2181 = vmatprep.mubr.f32.mxu0 0.0
      %2182 = vmatmul.mubr.f32.gmra.mrb[0].mxu0 %v1958
      %v2183 = vpop.f32.mrb[0].mxu0
      %v2184 = vadd.f32 %v1864, %v2183
      %v2185 = vpop.f32.mrb[0].mxu0
      %2186 = vmatprep.mubr.f32.mxu0 0.0
      %2187 = vmatmul.mubr.f32.gmra.mrb[0].mxu0 %v1961
      %v2188 = vpop.f32.mrb[0].mxu0
      %v2189 = vadd.f32 %v1864, %v2188
      %v2190 = vpop.f32.mrb[0].mxu0
      %2191 = vdwg.mxu0
      %2192 = vst.msk [vmem:[%s170] sm:$0xff] %vm171, %v2034
      %2193 = vst.msk [vmem:[%s170 + $0x8] sm:$0xff] %vm171, %v2039
      %2194 = vst.msk [vmem:[%s170 + $0x10] sm:$0xff] %vm171, %v2044
      %2195 = vst.msk [vmem:[%s170 + $0x18] sm:$0xff] %vm171, %v2049
      %2196 = vst.msk [vmem:[%s170 + $0x20] sm:$0xff] %vm171, %v2054
      %2197 = vst.msk [vmem:[%s170 + $0x28] sm:$0xff] %vm171, %v2059
      %2198 = vst.msk [vmem:[%s170 + $0x30] sm:$0xff] %vm171, %v2064
      %2199 = vst.msk [vmem:[%s170 + $0x38] sm:$0xff] %vm171, %v2069
      %2200 = vst.msk [vmem:[%s170 + $0x40] sm:$0xff] %vm171, %v2074
      %2201 = vst.msk [vmem:[%s170 + $0x48] sm:$0xff] %vm171, %v2079
      %2202 = vst.msk [vmem:[%s170 + $0x50] sm:$0xff] %vm171, %v2084
      %2203 = vst.msk [vmem:[%s170 + $0x58] sm:$0xff] %vm171, %v2089
      %2204 = vst.msk [vmem:[%s170 + $0x60] sm:$0xff] %vm171, %v2094
      %2205 = vst.msk [vmem:[%s170 + $0x68] sm:$0xff] %vm171, %v2099
      %2206 = vst.msk [vmem:[%s170 + $0x70] sm:$0xff] %vm171, %v2104
      %2207 = vst.msk [vmem:[%s170 + $0x78] sm:$0xff] %vm171, %v2109
      %2208 = vst.msk [vmem:[%s170 + $0x80] sm:$0xff] %vm171, %v2114
      %2209 = vst.msk [vmem:[%s170 + $0x88] sm:$0xff] %vm171, %v2119
      %2210 = vst.msk [vmem:[%s170 + $0x90] sm:$0xff] %vm171, %v2124
      %2211 = vst.msk [vmem:[%s170 + $0x98] sm:$0xff] %vm171, %v2129
      %2212 = vst.msk [vmem:[%s170 + $0xa0] sm:$0xff] %vm171, %v2134
      %2213 = vst.msk [vmem:[%s170 + $0xa8] sm:$0xff] %vm171, %v2139
      %2214 = vst.msk [vmem:[%s170 + $0xb0] sm:$0xff] %vm171, %v2144
      %2215 = vst.msk [vmem:[%s170 + $0xb8] sm:$0xff] %vm171, %v2149
      %2216 = vst.msk [vmem:[%s170 + $0xc0] sm:$0xff] %vm171, %v2154
      %2217 = vst.msk [vmem:[%s170 + $0xc8] sm:$0xff] %vm171, %v2159
      %2218 = vst.msk [vmem:[%s170 + $0xd0] sm:$0xff] %vm171, %v2164
      %2219 = vst.msk [vmem:[%s170 + $0xd8] sm:$0xff] %vm171, %v2169
      %2220 = vst.msk [vmem:[%s170 + $0xe0] sm:$0xff] %vm171, %v2174
      %2221 = vst.msk [vmem:[%s170 + $0xe8] sm:$0xff] %vm171, %v2179
      %2222 = vst.msk [vmem:[%s170 + $0xf0] sm:$0xff] %vm171, %v2184
      %2223 = vst.msk [vmem:[%s170 + $0xf8] sm:$0xff] %vm171, %v2189
      %p2224 = scmp.lt.s32.totalorder %s14, 1
      %s2225 = scalar_select %p2224, %s14, 1
      %s2226 = smul.addr %s2225, 32
      %s2227 = smul.addr %s2226, 8
      %s2228 = scalar_lea.vmem %s3, %s2227
      // Predicated region
      $region33: #{equal_conv2d_pallas.1} parent=31 // pred_check
        %p2229 = pneg %p100
      $region34: #{equal_conv2d_pallas.1} parent=31 // pred_check_branch
        %2231 = sbr.rel (%p2229) target = $region36
      $region35: #{equal_conv2d_pallas.1} parent=31 // pred_region
        _
      $region36: #{equal_conv2d_pallas.1} parent=31 // pred_fallthru
        _
    $region32: #{equal_conv2d_pallas.1} parent=5 // pred_fallthru
      _
    %p2232 = scmp.le.s32.totalorder 2, %s9
    // Predicated region
    $region37: #{equal_conv2d_pallas.1} parent=5 // pred_check
      %p2233 = pneg %p2232
    $region38: #{equal_conv2d_pallas.1} parent=5 // pred_check_branch
      %2235 = sbr.rel (%p2233) target = $region40
    $region39: #{equal_conv2d_pallas.1} parent=5 // pred_region
      %s2236 = ssub.s32 %s9, 2
      // Predicated region
      $region41: #{equal_conv2d_pallas.1} parent=39 // pred_check
        %p2237 = pneg %p106
      $region42: #{equal_conv2d_pallas.1} parent=39 // pred_check_branch
        %2239 = sbr.rel (%p2237) target = $region44
      $region43: #{equal_conv2d_pallas.1} parent=39 // pred_region
        %p2240 = scmp.lt.s32.totalorder %s15, 1
        %s2241 = scalar_select %p2240, %s15, 1
        %s2242 = smul.addr %s2241, 32
        %s2243 = smul.addr %s2242, 8
        %s2244 = scalar_lea.vmem %s3, %s2243
      $region44: #{equal_conv2d_pallas.1} parent=39 // pred_fallthru
        _
    $region40: #{equal_conv2d_pallas.1} parent=5 // pred_fallthru
      _
  $region6: #{equal_conv2d_pallas.1} parent=0 // loop_footer
    %s13 = sadd.s32 1, %s9
  $region7: #{equal_conv2d_pallas.1} parent=0 // loop_footer_branch
    %8 = sbr.rel target = $region3
  $region8: #{equal_conv2d_pallas.1} parent=0 // loop_exit
    _

</llo_original>
